<compile_context>
chip_gen: v5e
topology: v5e:2x2
jax: 0.10.0
libtpu: 0.0.40
codegen_flags: <defaults>
</compile_context>

<pallas_src>
import functools

import jax
import jax.numpy as jnp
from jax.experimental import pallas as pl
from jax.experimental.pallas import tpu as pltpu


def _vmem():
    return pl.BlockSpec(memory_space=pltpu.MemorySpace.VMEM)


def _round_up(x, m):
    return ((x + m - 1) // m) * m


# ----------------------------- in-kernel helpers -----------------------------

def _masked_attention(h, wqkv, add_mask, dpad, cd):
    """Masked scaled-dot-product attention with fused, lane-padded QKV weights.

    The 1/sqrt(d_k) scale is pre-folded into the Q segment of `wqkv`.
    `add_mask` is 0 where a knn edge exists and -1e9 elsewhere.
    `cd` is the matmul-operand dtype (f32 or bf16); accumulation stays f32.
    """
    qkv = jnp.dot(h.astype(cd), wqkv, preferred_element_type=jnp.float32)
    # dpad is a multiple of 128 -> these slices sit on vreg lane-tile
    # boundaries and are free views.
    q = qkv[:, :dpad]
    k = qkv[:, dpad:2 * dpad]
    v = qkv[:, 2 * dpad:]
    # q @ k^T without materializing a transpose: contract the shared last axis.
    scores = jax.lax.dot_general(
        q.astype(cd), k.astype(cd),
        dimension_numbers=(((1,), (1,)), ((), ())),
        preferred_element_type=jnp.float32)
    scores = scores + add_mask
    m = jnp.max(scores, axis=-1, keepdims=True)
    e = jnp.exp(scores - m)
    inv = pl.reciprocal(jnp.sum(e, axis=-1, keepdims=True))  # exact (EUP)
    attn = e * inv
    # dropout(attn) is identity in eval mode
    out = jnp.dot(attn.astype(cd), v.astype(cd),
                  preferred_element_type=jnp.float32)
    return out, attn


# --------------------------------- kernel ------------------------------------

def _past_kernel(dpad, cd, return_attn,
                 x_ref, enc_w_ref, enc_b_ref,
                 enc_a1_wqkv_ref, enc_a2_wqkv_ref,
                 mulv_w_ref, mulv_b_ref,
                 dec_a1_wqkv_ref, dec_a2_wqkv_ref, dec_w_ref,
                 mask_ref, eps_ref,
                 xcons_ref, lat_ref, *attn_refs):
    # int8 adjacency -> additive mask (0 where edge / self loop, -1e9 elsewhere)
    edge = mask_ref[...].astype(jnp.int32)
    add_mask = jnp.where(edge != 0, 0.0, -1e9)

    # ----------------------------- encoder -----------------------------------
    # cat([enc_fc1(x), enc_fc2(x)], -1) as a single fused, lane-padded matmul
    h = (jnp.dot(x_ref[...], enc_w_ref[...], preferred_element_type=jnp.float32)
         + enc_b_ref[...])
    h, ea1 = _masked_attention(h, enc_a1_wqkv_ref[...], add_mask, dpad, cd)
    h, ea2 = _masked_attention(h, enc_a2_wqkv_ref[...], add_mask, dpad, cd)
    # fused [mu_fc | logvar_fc]
    ml = (jnp.dot(h.astype(cd), mulv_w_ref[...],
                  preferred_element_type=jnp.float32)
          + mulv_b_ref[...])
    mu = ml[:, :dpad]
    lv = ml[:, dpad:]

    # -------------------------- reparameterize --------------------------------
    # z = eps * exp(0.5 * logvar) + mu   (eps padding lanes are zero, so z
    # padding lanes stay zero)
    z = eps_ref[...] * jnp.exp(0.5 * lv) + mu

    # lane-dense [mu | logvar | z] slab (each segment is a full 128-lane tile)
    lat_ref[:, :dpad] = mu
    lat_ref[:, dpad:2 * dpad] = lv
    lat_ref[:, 2 * dpad:] = z

    # ----------------------------- decoder ------------------------------------
    hd, da1 = _masked_attention(z, dec_a1_wqkv_ref[...], add_mask, dpad, cd)
    hd, da2 = _masked_attention(hd, dec_a2_wqkv_ref[...], add_mask, dpad, cd)
    # dec_fc: nn.Linear(d_lat, d_in, bias=False), lane-padded output
    xcons_ref[...] = jnp.dot(hd.astype(cd), dec_w_ref[...],
                             preferred_element_type=jnp.float32)

    if return_attn:
        ea1_ref, ea2_ref, da1_ref, da2_ref = attn_refs
        ea1_ref[...] = ea1
        ea2_ref[...] = ea2
        da1_ref[...] = da1
        da2_ref[...] = da2


# ------------------------ parameters & fusion ---------------------------------

def init_past_params(key, d_in, d_lat):
    """Raw parameters mirroring the PyTorch module structure."""
    assert d_in > d_lat
    d_prior = d_lat // 5
    ks = jax.random.split(key, 20)

    def w(k, din, dout, s=0.1):
        return s * jax.random.normal(k, (din, dout), jnp.float32)

    def b(k, dout, s=0.01):
        return s * jax.random.normal(k, (1, dout), jnp.float32)

    p = {
        # BayesianLinear(d_in, d_prior): mean weight + bias (frozen forward)
        "enc_fc1_w": w(ks[0], d_in, d_prior),
        "enc_fc1_b": b(ks[1], d_prior),
        # nn.Linear(d_in, d_lat - d_prior, bias=False)
        "enc_fc2_w": w(ks[2], d_in, d_lat - d_prior),
        # mu_fc / logvar_fc: nn.Linear(d_lat, d_lat, bias=True)
        "mu_w": w(ks[3], d_lat, d_lat), "mu_b": b(ks[4], d_lat),
        "lv_w": w(ks[5], d_lat, d_lat), "lv_b": b(ks[6], d_lat),
        # dec_fc: nn.Linear(d_lat, d_in, bias=False)
        "dec_w": w(ks[7], d_lat, d_in),
    }
    # 4 masked attention blocks (d_in=d_out=d_k=d_lat, bias-free Q/K/V)
    for i, name in enumerate(["enc_attn1", "enc_attn2", "dec_attn1", "dec_attn2"]):
        kq, kk, kv = jax.random.split(ks[8 + i], 3)
        p[name + "_wq"] = w(kq, d_lat, d_lat)
        p[name + "_wk"] = w(kk, d_lat, d_lat)
        p[name + "_wv"] = w(kv, d_lat, d_lat)
    return p


def fuse_past_params(p, d_in, d_lat, compute_dtype=jnp.float32):
    """One-time weight repacking + 128-lane padding (hoisted out of the fwd)."""
    d_prior = d_lat // 5
    dpad = _round_up(max(d_lat, 1), 128)
    din_pad = _round_up(max(d_in, 1), 128)
    scale = 1.0 / float(d_lat) ** 0.5

    def pad2(a, rows, cols):
        return jnp.pad(a, ((0, rows - a.shape[0]), (0, cols - a.shape[1])))

    fp = {"dpad": dpad, "din_pad": din_pad}

    # encoder projection: [enc_fc1 | enc_fc2 | zero-pad] as one matmul
    enc_w = jnp.concatenate([p["enc_fc1_w"], p["enc_fc2_w"]], axis=1)
    enc_b = jnp.concatenate(
        [p["enc_fc1_b"], jnp.zeros((1, d_lat - d_prior), jnp.float32)], axis=1)
    fp["enc_w"] = pad2(enc_w, d_in, dpad).astype(compute_dtype)
    fp["enc_b"] = pad2(enc_b, 1, dpad)                     # bias stays f32

    # attention blocks: fused [Wq*scale | Wk | Wv], each segment padded to dpad
    for name in ["enc_attn1", "enc_attn2", "dec_attn1", "dec_attn2"]:
        fp[name + "_wqkv"] = jnp.concatenate(
            [pad2(p[name + "_wq"] * scale, dpad, dpad),
             pad2(p[name + "_wk"], dpad, dpad),
             pad2(p[name + "_wv"], dpad, dpad)], axis=1).astype(compute_dtype)

    # fused [mu_fc | logvar_fc], each segment padded to dpad
    fp["mulv_w"] = jnp.concatenate(
        [pad2(p["mu_w"], dpad, dpad), pad2(p["lv_w"], dpad, dpad)],
        axis=1).astype(compute_dtype)
    fp["mulv_b"] = jnp.concatenate(
        [pad2(p["mu_b"], 1, dpad), pad2(p["lv_b"], 1, dpad)], axis=1)

    fp["dec_w"] = pad2(p["dec_w"], dpad, din_pad).astype(compute_dtype)
    return fp


# ------------------------------- forward ---------------------------------------

def past_forward(fp, x, knn_graph, eps, d_lat, *,
                 return_attn=True, compute_dtype=jnp.float32):
    n, d_in = x.shape
    dpad, din_pad = fp["dpad"], fp["din_pad"]

    # int8 adjacency (nonzero => edge); mask is rebuilt in-kernel
    mask_i8 = (knn_graph != 0).astype(jnp.int8)
    # pad reparameterization noise to dpad lanes (padding lanes = 0 -> z pad = 0)
    eps_pad = jnp.zeros((n, dpad), jnp.float32).at[:, :d_lat].set(eps)
    x_c = x.astype(compute_dtype)

    out_shapes = [jax.ShapeDtypeStruct((n, din_pad), jnp.float32),   # x_cons pad
                  jax.ShapeDtypeStruct((n, 3 * dpad), jnp.float32)]  # mu|lv|z
    if return_attn:
        out_shapes += [jax.ShapeDtypeStruct((n, n), jnp.float32)] * 4

    outs = pl.pallas_call(
        functools.partial(_past_kernel, dpad, compute_dtype, return_attn),
        out_shape=tuple(out_shapes),
        in_specs=[_vmem()] * 12,
        out_specs=tuple(_vmem() for _ in out_shapes),
        compiler_params=pltpu.CompilerParams(
            vmem_limit_bytes=32 * 1024 * 1024),
    )(x_c, fp["enc_w"], fp["enc_b"],
      fp["enc_attn1_wqkv"], fp["enc_attn2_wqkv"],
      fp["mulv_w"], fp["mulv_b"],
      fp["dec_attn1_wqkv"], fp["dec_attn2_wqkv"], fp["dec_w"],
      mask_i8, eps_pad)

    xcons_pad, lat = outs[0], outs[1]
    x_cons = xcons_pad[:, :d_in]
    mu = lat[:, :d_lat]
    logvar = lat[:, dpad:dpad + d_lat]
    # z (if needed): lat[:, 2*dpad:2*dpad + d_lat]

    if return_attn:
        enc_attn = {"attn1": outs[2], "attn2": outs[3]}
        dec_attn = {"attn1": outs[4], "attn2": outs[5]}
    else:
        enc_attn = dec_attn = None
    return x_cons, mu, logvar, enc_attn, dec_attn


# --------------------------------- main ----------------------------------------

if __name__ == "__main__":
    key = jax.random.PRNGKey(0)
    k_param, k_x, k_coord, k_eps = jax.random.split(key, 4)

    N = 16          # number of spots (sequence length of attention)
    D_IN = 32       # number of genes
    D_LAT = 20      # latent dimension (d_in > d_lat); d_prior = 4
    K_NEIGHBORS = 3

    raw_params = init_past_params(k_param, D_IN, D_LAT)
    # compute_dtype=jnp.bfloat16 enables bf16 matmul operands on v6e/v7x;
    # default f32 preserves PAST numerics exactly.
    params = fuse_past_params(raw_params, D_IN, D_LAT,
                              compute_dtype=jnp.float32)

    # synthetic preprocessed expression matrix
    x = jax.random.normal(k_x, (N, D_IN), jnp.float32)

    # build a dense kNN graph from random 2D spatial coordinates (+ self loops)
    coords = jax.random.uniform(k_coord, (N, 2), jnp.float32)
    d2 = jnp.sum((coords[:, None, :] - coords[None, :, :]) ** 2, axis=-1)
    d2 = d2 + jnp.eye(N, dtype=jnp.float32) * 1e9  # exclude self from kNN
    nbr_idx = jnp.argsort(d2, axis=1)[:, :K_NEIGHBORS]
    knn = jnp.zeros((N, N), jnp.float32).at[
        jnp.arange(N)[:, None], nbr_idx].set(1.0)
    knn_graph = knn + jnp.eye(N, dtype=jnp.float32)

    # reparameterization noise (FloatTensor(...).normal_() equivalent)
    eps = jax.random.normal(k_eps, (N, D_LAT), jnp.float32)

    x_cons, mu, logvar, enc_attn, dec_attn = past_forward(
        params, x, knn_graph, eps, D_LAT, return_attn=True)

    jax.block_until_ready((x_cons, mu, logvar,
                           enc_attn["attn1"], enc_attn["attn2"],
                           dec_attn["attn1"], dec_attn["attn2"]))

    assert x_cons.shape == (N, D_IN)
    assert mu.shape == (N, D_LAT) and logvar.shape == (N, D_LAT)
    assert enc_attn["attn1"].shape == (N, N)
    assert enc_attn["attn2"].shape == (N, N)
    assert dec_attn["attn1"].shape == (N, N)
    assert dec_attn["attn2"].shape == (N, N)
    assert bool(jnp.all(jnp.isfinite(x_cons)))
    assert bool(jnp.all(jnp.isfinite(mu)))
    # attention rows are probability distributions
    assert bool(jnp.allclose(jnp.sum(enc_attn["attn1"], axis=-1), 1.0,
                             atol=1e-4))
    print("KERNEL_OK")
</pallas_src>

<mosaic_0001>
module attributes {stable_mosaic.version = 11 : i64} {
  func.func @_past_kernel(%arg0: memref<16x32xf32, #tpu.memory_space<vmem>>, %arg1: memref<32x128xf32, #tpu.memory_space<vmem>>, %arg2: memref<1x128xf32, #tpu.memory_space<vmem>>, %arg3: memref<128x384xf32, #tpu.memory_space<vmem>>, %arg4: memref<128x384xf32, #tpu.memory_space<vmem>>, %arg5: memref<128x256xf32, #tpu.memory_space<vmem>>, %arg6: memref<1x256xf32, #tpu.memory_space<vmem>>, %arg7: memref<128x384xf32, #tpu.memory_space<vmem>>, %arg8: memref<128x384xf32, #tpu.memory_space<vmem>>, %arg9: memref<128x128xf32, #tpu.memory_space<vmem>>, %arg10: memref<16x16xi8, #tpu.memory_space<vmem>>, %arg11: memref<16x128xf32, #tpu.memory_space<vmem>>, %arg12: memref<16x128xf32, #tpu.memory_space<vmem>>, %arg13: memref<16x384xf32, #tpu.memory_space<vmem>>, %arg14: memref<16x16xf32, #tpu.memory_space<vmem>>, %arg15: memref<16x16xf32, #tpu.memory_space<vmem>>, %arg16: memref<16x16xf32, #tpu.memory_space<vmem>>, %arg17: memref<16x16xf32, #tpu.memory_space<vmem>>) attributes {dimension_semantics = [], scalar_prefetch = 0 : i64, scratch_operands = 0 : i64, tpu.core_type = #tpu.core_type<tc>} {
    %c0 = arith.constant 0 : index
    %c0_0 = arith.constant 0 : index
    %0 = vector.load %arg10[%c0, %c0_0] : memref<16x16xi8, #tpu.memory_space<vmem>>, vector<16x16xi8>
    %1 = arith.extsi %0 : vector<16x16xi8> to vector<16x16xi32>
    %c0_i32 = arith.constant 0 : i32
    %2 = vector.broadcast %c0_i32 : i32 to vector<16x16xi32>
    %3 = arith.cmpi ne, %1, %2 : vector<16x16xi32>
    %cst = arith.constant 0.000000e+00 : f32
    %cst_1 = arith.constant -1.000000e+09 : f32
    %4 = vector.broadcast %cst : f32 to vector<16x16xf32>
    %5 = vector.broadcast %cst_1 : f32 to vector<16x16xf32>
    %6 = arith.select %3, %4, %5 : vector<16x16xi1>, vector<16x16xf32>
    %c0_2 = arith.constant 0 : index
    %c0_3 = arith.constant 0 : index
    %7 = vector.load %arg0[%c0_2, %c0_3] : memref<16x32xf32, #tpu.memory_space<vmem>>, vector<16x32xf32>
    %c0_4 = arith.constant 0 : index
    %c0_5 = arith.constant 0 : index
    %8 = vector.load %arg1[%c0_4, %c0_5] : memref<32x128xf32, #tpu.memory_space<vmem>>, vector<32x128xf32>
    %cst_6 = arith.constant dense<0.000000e+00> : vector<16x128xf32>
    %9 = tpu.matmul %7, %8, %cst_6 {dimension_numbers = #tpu.dot_dimension_numbers<[1], [0], [0], [1], [0, 0, 1, 1], [], []>} : vector<16x32xf32>, vector<32x128xf32>, vector<16x128xf32> -> vector<16x128xf32>
    %c0_7 = arith.constant 0 : index
    %c0_8 = arith.constant 0 : index
    %10 = vector.load %arg2[%c0_7, %c0_8] : memref<1x128xf32, #tpu.memory_space<vmem>>, vector<1x128xf32>
    %11 = vector.broadcast %10 : vector<1x128xf32> to vector<16x128xf32>
    %12 = arith.addf %9, %11 : vector<16x128xf32>
    %c0_9 = arith.constant 0 : index
    %c0_10 = arith.constant 0 : index
    %13 = vector.load %arg3[%c0_9, %c0_10] : memref<128x384xf32, #tpu.memory_space<vmem>>, vector<128x384xf32>
    %cst_11 = arith.constant dense<0.000000e+00> : vector<16x384xf32>
    %14 = tpu.matmul %12, %13, %cst_11 {dimension_numbers = #tpu.dot_dimension_numbers<[1], [0], [0], [1], [0, 0, 1, 1], [], []>} : vector<16x128xf32>, vector<128x384xf32>, vector<16x384xf32> -> vector<16x384xf32>
    %15 = vector.extract_strided_slice %14 {offsets = [0, 0], sizes = [16, 128], strides = [1, 1]} : vector<16x384xf32> to vector<16x128xf32>
    %16 = vector.extract_strided_slice %14 {offsets = [0, 128], sizes = [16, 128], strides = [1, 1]} : vector<16x384xf32> to vector<16x128xf32>
    %17 = vector.extract_strided_slice %14 {offsets = [0, 256], sizes = [16, 128], strides = [1, 1]} : vector<16x384xf32> to vector<16x128xf32>
    %cst_12 = arith.constant dense<0.000000e+00> : vector<16x16xf32>
    %18 = tpu.matmul %15, %16, %cst_12 {dimension_numbers = #tpu.dot_dimension_numbers<[1], [1], [0], [0], [0, 0, 1, 0], [], []>} : vector<16x128xf32>, vector<16x128xf32>, vector<16x16xf32> -> vector<16x16xf32>
    %19 = arith.addf %18, %6 : vector<16x16xf32>
    %cst_13 = arith.constant dense<0xFF800000> : vector<16xf32>
    %20 = vector.multi_reduction <maximumf>, %19, %cst_13 [1] : vector<16x16xf32> to vector<16xf32>
    %21 = vector.shape_cast %20 : vector<16xf32> to vector<16x1xf32>
    %22 = vector.broadcast %21 : vector<16x1xf32> to vector<16x16xf32>
    %23 = arith.subf %19, %22 : vector<16x16xf32>
    %24 = math.exp %23 : vector<16x16xf32>
    %cst_14 = arith.constant dense<0.000000e+00> : vector<16xf32>
    %25 = vector.multi_reduction <add>, %24, %cst_14 [1] : vector<16x16xf32> to vector<16xf32>
    %26 = vector.shape_cast %25 : vector<16xf32> to vector<16x1xf32>
    %27 = tpu.reciprocal %26 : vector<16x1xf32> -> vector<16x1xf32>
    %28 = vector.broadcast %27 : vector<16x1xf32> to vector<16x16xf32>
    %29 = arith.mulf %24, %28 : vector<16x16xf32>
    %cst_15 = arith.constant dense<0.000000e+00> : vector<16x128xf32>
    %30 = tpu.matmul %29, %17, %cst_15 {dimension_numbers = #tpu.dot_dimension_numbers<[1], [0], [0], [1], [0, 0, 1, 1], [], []>} : vector<16x16xf32>, vector<16x128xf32>, vector<16x128xf32> -> vector<16x128xf32>
    %c0_16 = arith.constant 0 : index
    %c0_17 = arith.constant 0 : index
    %31 = vector.load %arg4[%c0_16, %c0_17] : memref<128x384xf32, #tpu.memory_space<vmem>>, vector<128x384xf32>
    %cst_18 = arith.constant dense<0.000000e+00> : vector<16x384xf32>
    %32 = tpu.matmul %30, %31, %cst_18 {dimension_numbers = #tpu.dot_dimension_numbers<[1], [0], [0], [1], [0, 0, 1, 1], [], []>} : vector<16x128xf32>, vector<128x384xf32>, vector<16x384xf32> -> vector<16x384xf32>
    %33 = vector.extract_strided_slice %32 {offsets = [0, 0], sizes = [16, 128], strides = [1, 1]} : vector<16x384xf32> to vector<16x128xf32>
    %34 = vector.extract_strided_slice %32 {offsets = [0, 128], sizes = [16, 128], strides = [1, 1]} : vector<16x384xf32> to vector<16x128xf32>
    %35 = vector.extract_strided_slice %32 {offsets = [0, 256], sizes = [16, 128], strides = [1, 1]} : vector<16x384xf32> to vector<16x128xf32>
    %cst_19 = arith.constant dense<0.000000e+00> : vector<16x16xf32>
    %36 = tpu.matmul %33, %34, %cst_19 {dimension_numbers = #tpu.dot_dimension_numbers<[1], [1], [0], [0], [0, 0, 1, 0], [], []>} : vector<16x128xf32>, vector<16x128xf32>, vector<16x16xf32> -> vector<16x16xf32>
    %37 = arith.addf %36, %6 : vector<16x16xf32>
    %cst_20 = arith.constant dense<0xFF800000> : vector<16xf32>
    %38 = vector.multi_reduction <maximumf>, %37, %cst_20 [1] : vector<16x16xf32> to vector<16xf32>
    %39 = vector.shape_cast %38 : vector<16xf32> to vector<16x1xf32>
    %40 = vector.broadcast %39 : vector<16x1xf32> to vector<16x16xf32>
    %41 = arith.subf %37, %40 : vector<16x16xf32>
    %42 = math.exp %41 : vector<16x16xf32>
    %cst_21 = arith.constant dense<0.000000e+00> : vector<16xf32>
    %43 = vector.multi_reduction <add>, %42, %cst_21 [1] : vector<16x16xf32> to vector<16xf32>
    %44 = vector.shape_cast %43 : vector<16xf32> to vector<16x1xf32>
    %45 = tpu.reciprocal %44 : vector<16x1xf32> -> vector<16x1xf32>
    %46 = vector.broadcast %45 : vector<16x1xf32> to vector<16x16xf32>
    %47 = arith.mulf %42, %46 : vector<16x16xf32>
    %cst_22 = arith.constant dense<0.000000e+00> : vector<16x128xf32>
    %48 = tpu.matmul %47, %35, %cst_22 {dimension_numbers = #tpu.dot_dimension_numbers<[1], [0], [0], [1], [0, 0, 1, 1], [], []>} : vector<16x16xf32>, vector<16x128xf32>, vector<16x128xf32> -> vector<16x128xf32>
    %c0_23 = arith.constant 0 : index
    %c0_24 = arith.constant 0 : index
    %49 = vector.load %arg5[%c0_23, %c0_24] : memref<128x256xf32, #tpu.memory_space<vmem>>, vector<128x256xf32>
    %cst_25 = arith.constant dense<0.000000e+00> : vector<16x256xf32>
    %50 = tpu.matmul %48, %49, %cst_25 {dimension_numbers = #tpu.dot_dimension_numbers<[1], [0], [0], [1], [0, 0, 1, 1], [], []>} : vector<16x128xf32>, vector<128x256xf32>, vector<16x256xf32> -> vector<16x256xf32>
    %c0_26 = arith.constant 0 : index
    %c0_27 = arith.constant 0 : index
    %51 = vector.load %arg6[%c0_26, %c0_27] : memref<1x256xf32, #tpu.memory_space<vmem>>, vector<1x256xf32>
    %52 = vector.broadcast %51 : vector<1x256xf32> to vector<16x256xf32>
    %53 = arith.addf %50, %52 : vector<16x256xf32>
    %54 = vector.extract_strided_slice %53 {offsets = [0, 0], sizes = [16, 128], strides = [1, 1]} : vector<16x256xf32> to vector<16x128xf32>
    %55 = vector.extract_strided_slice %53 {offsets = [0, 128], sizes = [16, 128], strides = [1, 1]} : vector<16x256xf32> to vector<16x128xf32>
    %c0_28 = arith.constant 0 : index
    %c0_29 = arith.constant 0 : index
    %56 = vector.load %arg11[%c0_28, %c0_29] : memref<16x128xf32, #tpu.memory_space<vmem>>, vector<16x128xf32>
    %cst_30 = arith.constant 5.000000e-01 : f32
    %57 = vector.broadcast %cst_30 : f32 to vector<16x128xf32>
    %58 = arith.mulf %57, %55 : vector<16x128xf32>
    %59 = math.exp %58 : vector<16x128xf32>
    %60 = arith.mulf %56, %59 : vector<16x128xf32>
    %61 = arith.addf %60, %54 : vector<16x128xf32>
    %c0_31 = arith.constant 0 : index
    %c0_32 = arith.constant 0 : index
    %62 = vector.load %arg13[%c0_31, %c0_32] : memref<16x384xf32, #tpu.memory_space<vmem>>, vector<16x128xf32>
    tpu.vector_store %arg13[%c0_31, %c0_32], %54 {strides = array<i32>} : memref<16x384xf32, #tpu.memory_space<vmem>>, vector<16x128xf32>,
    %c0_33 = arith.constant 0 : index
    %c128 = arith.constant 128 : index
    %63 = vector.load %arg13[%c0_33, %c128] : memref<16x384xf32, #tpu.memory_space<vmem>>, vector<16x128xf32>
    tpu.vector_store %arg13[%c0_33, %c128], %55 {strides = array<i32>} : memref<16x384xf32, #tpu.memory_space<vmem>>, vector<16x128xf32>,
    %c0_34 = arith.constant 0 : index
    %c256 = arith.constant 256 : index
    %64 = vector.load %arg13[%c0_34, %c256] : memref<16x384xf32, #tpu.memory_space<vmem>>, vector<16x128xf32>
    tpu.vector_store %arg13[%c0_34, %c256], %61 {strides = array<i32>} : memref<16x384xf32, #tpu.memory_space<vmem>>, vector<16x128xf32>,
    %c0_35 = arith.constant 0 : index
    %c0_36 = arith.constant 0 : index
    %65 = vector.load %arg7[%c0_35, %c0_36] : memref<128x384xf32, #tpu.memory_space<vmem>>, vector<128x384xf32>
    %cst_37 = arith.constant dense<0.000000e+00> : vector<16x384xf32>
    %66 = tpu.matmul %61, %65, %cst_37 {dimension_numbers = #tpu.dot_dimension_numbers<[1], [0], [0], [1], [0, 0, 1, 1], [], []>} : vector<16x128xf32>, vector<128x384xf32>, vector<16x384xf32> -> vector<16x384xf32>
    %67 = vector.extract_strided_slice %66 {offsets = [0, 0], sizes = [16, 128], strides = [1, 1]} : vector<16x384xf32> to vector<16x128xf32>
    %68 = vector.extract_strided_slice %66 {offsets = [0, 128], sizes = [16, 128], strides = [1, 1]} : vector<16x384xf32> to vector<16x128xf32>
    %69 = vector.extract_strided_slice %66 {offsets = [0, 256], sizes = [16, 128], strides = [1, 1]} : vector<16x384xf32> to vector<16x128xf32>
    %cst_38 = arith.constant dense<0.000000e+00> : vector<16x16xf32>
    %70 = tpu.matmul %67, %68, %cst_38 {dimension_numbers = #tpu.dot_dimension_numbers<[1], [1], [0], [0], [0, 0, 1, 0], [], []>} : vector<16x128xf32>, vector<16x128xf32>, vector<16x16xf32> -> vector<16x16xf32>
    %71 = arith.addf %70, %6 : vector<16x16xf32>
    %cst_39 = arith.constant dense<0xFF800000> : vector<16xf32>
    %72 = vector.multi_reduction <maximumf>, %71, %cst_39 [1] : vector<16x16xf32> to vector<16xf32>
    %73 = vector.shape_cast %72 : vector<16xf32> to vector<16x1xf32>
    %74 = vector.broadcast %73 : vector<16x1xf32> to vector<16x16xf32>
    %75 = arith.subf %71, %74 : vector<16x16xf32>
    %76 = math.exp %75 : vector<16x16xf32>
    %cst_40 = arith.constant dense<0.000000e+00> : vector<16xf32>
    %77 = vector.multi_reduction <add>, %76, %cst_40 [1] : vector<16x16xf32> to vector<16xf32>
    %78 = vector.shape_cast %77 : vector<16xf32> to vector<16x1xf32>
    %79 = tpu.reciprocal %78 : vector<16x1xf32> -> vector<16x1xf32>
    %80 = vector.broadcast %79 : vector<16x1xf32> to vector<16x16xf32>
    %81 = arith.mulf %76, %80 : vector<16x16xf32>
    %cst_41 = arith.constant dense<0.000000e+00> : vector<16x128xf32>
    %82 = tpu.matmul %81, %69, %cst_41 {dimension_numbers = #tpu.dot_dimension_numbers<[1], [0], [0], [1], [0, 0, 1, 1], [], []>} : vector<16x16xf32>, vector<16x128xf32>, vector<16x128xf32> -> vector<16x128xf32>
    %c0_42 = arith.constant 0 : index
    %c0_43 = arith.constant 0 : index
    %83 = vector.load %arg8[%c0_42, %c0_43] : memref<128x384xf32, #tpu.memory_space<vmem>>, vector<128x384xf32>
    %cst_44 = arith.constant dense<0.000000e+00> : vector<16x384xf32>
    %84 = tpu.matmul %82, %83, %cst_44 {dimension_numbers = #tpu.dot_dimension_numbers<[1], [0], [0], [1], [0, 0, 1, 1], [], []>} : vector<16x128xf32>, vector<128x384xf32>, vector<16x384xf32> -> vector<16x384xf32>
    %85 = vector.extract_strided_slice %84 {offsets = [0, 0], sizes = [16, 128], strides = [1, 1]} : vector<16x384xf32> to vector<16x128xf32>
    %86 = vector.extract_strided_slice %84 {offsets = [0, 128], sizes = [16, 128], strides = [1, 1]} : vector<16x384xf32> to vector<16x128xf32>
    %87 = vector.extract_strided_slice %84 {offsets = [0, 256], sizes = [16, 128], strides = [1, 1]} : vector<16x384xf32> to vector<16x128xf32>
    %cst_45 = arith.constant dense<0.000000e+00> : vector<16x16xf32>
    %88 = tpu.matmul %85, %86, %cst_45 {dimension_numbers = #tpu.dot_dimension_numbers<[1], [1], [0], [0], [0, 0, 1, 0], [], []>} : vector<16x128xf32>, vector<16x128xf32>, vector<16x16xf32> -> vector<16x16xf32>
    %89 = arith.addf %88, %6 : vector<16x16xf32>
    %cst_46 = arith.constant dense<0xFF800000> : vector<16xf32>
    %90 = vector.multi_reduction <maximumf>, %89, %cst_46 [1] : vector<16x16xf32> to vector<16xf32>
    %91 = vector.shape_cast %90 : vector<16xf32> to vector<16x1xf32>
    %92 = vector.broadcast %91 : vector<16x1xf32> to vector<16x16xf32>
    %93 = arith.subf %89, %92 : vector<16x16xf32>
    %94 = math.exp %93 : vector<16x16xf32>
    %cst_47 = arith.constant dense<0.000000e+00> : vector<16xf32>
    %95 = vector.multi_reduction <add>, %94, %cst_47 [1] : vector<16x16xf32> to vector<16xf32>
    %96 = vector.shape_cast %95 : vector<16xf32> to vector<16x1xf32>
    %97 = tpu.reciprocal %96 : vector<16x1xf32> -> vector<16x1xf32>
    %98 = vector.broadcast %97 : vector<16x1xf32> to vector<16x16xf32>
    %99 = arith.mulf %94, %98 : vector<16x16xf32>
    %cst_48 = arith.constant dense<0.000000e+00> : vector<16x128xf32>
    %100 = tpu.matmul %99, %87, %cst_48 {dimension_numbers = #tpu.dot_dimension_numbers<[1], [0], [0], [1], [0, 0, 1, 1], [], []>} : vector<16x16xf32>, vector<16x128xf32>, vector<16x128xf32> -> vector<16x128xf32>
    %c0_49 = arith.constant 0 : index
    %c0_50 = arith.constant 0 : index
    %101 = vector.load %arg9[%c0_49, %c0_50] : memref<128x128xf32, #tpu.memory_space<vmem>>, vector<128x128xf32>
    %cst_51 = arith.constant dense<0.000000e+00> : vector<16x128xf32>
    %102 = tpu.matmul %100, %101, %cst_51 {dimension_numbers = #tpu.dot_dimension_numbers<[1], [0], [0], [1], [0, 0, 1, 1], [], []>} : vector<16x128xf32>, vector<128x128xf32>, vector<16x128xf32> -> vector<16x128xf32>
    %c0_52 = arith.constant 0 : index
    %c0_53 = arith.constant 0 : index
    %103 = vector.load %arg12[%c0_52, %c0_53] : memref<16x128xf32, #tpu.memory_space<vmem>>, vector<16x128xf32>
    tpu.vector_store %arg12[%c0_52, %c0_53], %102 {strides = array<i32>} : memref<16x128xf32, #tpu.memory_space<vmem>>, vector<16x128xf32>,
    %c0_54 = arith.constant 0 : index
    %c0_55 = arith.constant 0 : index
    %104 = vector.load %arg14[%c0_54, %c0_55] : memref<16x16xf32, #tpu.memory_space<vmem>>, vector<16x16xf32>
    tpu.vector_store %arg14[%c0_54, %c0_55], %29 {strides = array<i32>} : memref<16x16xf32, #tpu.memory_space<vmem>>, vector<16x16xf32>,
    %c0_56 = arith.constant 0 : index
    %c0_57 = arith.constant 0 : index
    %105 = vector.load %arg15[%c0_56, %c0_57] : memref<16x16xf32, #tpu.memory_space<vmem>>, vector<16x16xf32>
    tpu.vector_store %arg15[%c0_56, %c0_57], %47 {strides = array<i32>} : memref<16x16xf32, #tpu.memory_space<vmem>>, vector<16x16xf32>,
    %c0_58 = arith.constant 0 : index
    %c0_59 = arith.constant 0 : index
    %106 = vector.load %arg16[%c0_58, %c0_59] : memref<16x16xf32, #tpu.memory_space<vmem>>, vector<16x16xf32>
    tpu.vector_store %arg16[%c0_58, %c0_59], %81 {strides = array<i32>} : memref<16x16xf32, #tpu.memory_space<vmem>>, vector<16x16xf32>,
    %c0_60 = arith.constant 0 : index
    %c0_61 = arith.constant 0 : index
    %107 = vector.load %arg17[%c0_60, %c0_61] : memref<16x16xf32, #tpu.memory_space<vmem>>, vector<16x16xf32>
    tpu.vector_store %arg17[%c0_60, %c0_61], %99 {strides = array<i32>} : memref<16x16xf32, #tpu.memory_space<vmem>>, vector<16x16xf32>,
    return
  }
}

</mosaic_0001>

<llo_original>
// kernel: tpu_custom_call.1
$region0: #{tpu_custom_call.1}
  #allocation0 [shape = 'u32[]', space=smem, size = 0x4, offset = 0x4, fixed_abs, tag = 'smem constant byte address 0x4 - core index']
  #allocation1 [shape = 'u32[72,128]{1,0:T(1,128)}', space=vmem, size = 0x9000, scoped, tag = 'internal scratch']
  %s0 = inlined_call_operand.hbm [shape: f32[16,32], index: 0, kind: input, shape index: {}]
  %s1 = inlined_call_operand.hbm [shape: f32[32,128], index: 1, kind: input, shape index: {}]
  %s2 = inlined_call_operand.vmem [shape: f32[1,128], index: 2, kind: input, shape index: {}]
  %s3 = inlined_call_operand.hbm [shape: f32[128,384], index: 3, kind: input, shape index: {}]
  %s4 = inlined_call_operand.hbm [shape: f32[128,384], index: 4, kind: input, shape index: {}]
  %s5 = inlined_call_operand.hbm [shape: f32[128,256], index: 5, kind: input, shape index: {}]
  %s6 = inlined_call_operand.vmem [shape: f32[1,256], index: 6, kind: input, shape index: {}]
  %s7 = inlined_call_operand.hbm [shape: f32[128,384], index: 7, kind: input, shape index: {}]
  %s8 = inlined_call_operand.hbm [shape: f32[128,384], index: 8, kind: input, shape index: {}]
  %s9 = inlined_call_operand.hbm [shape: f32[128,128], index: 9, kind: input, shape index: {}]
  %s10 = inlined_call_operand.vmem [shape: s8[16,16], index: 10, kind: input, shape index: {}]
  %s11 = inlined_call_operand.hbm [shape: f32[16,128], index: 11, kind: input, shape index: {}]
  %s12 = inlined_call_operand.hbm [shape: f32[16,128], index: 12, kind: output, shape index: {0}]
  %s13 = inlined_call_operand.hbm [shape: f32[16,384], index: 13, kind: output, shape index: {1}]
  %s14 = inlined_call_operand.hbm [shape: f32[16,16], index: 14, kind: output, shape index: {2}]
  %s15 = inlined_call_operand.hbm [shape: f32[16,16], index: 15, kind: output, shape index: {3}]
  %s16 = inlined_call_operand.hbm [shape: f32[16,16], index: 16, kind: output, shape index: {4}]
  %s17 = inlined_call_operand.hbm [shape: f32[16,16], index: 17, kind: output, shape index: {5}]
  %18 = xla_tuple %s12, %s13, %s14, %s15, %s16, %s17
  %s19 = sld [smem:[#allocation0]]
  $region134: #{tpu_custom_call.1} parent=0
    _
  %s21 = ssub.s32 1, %s19
  %s22 = scalar_select 0, %s21, %s19
  $region1: #{tpu_custom_call.1} parent=0
    #allocation2 [shape = 'u8[8192]{0}', space=vmem, size = 0x2000, scoped, tag = 'input window, operand 0, single buffered']
    #allocation3 [shape = 's32[1]{0}', space=sflag, size = 0x4, scoped, tag = 'scoped memory for tpu_custom_call.1']
    #allocation4 [shape = 's32[1]{0}', space=sflag, size = 0x4, scoped, tag = 'scoped memory for tpu_custom_call.1']
    #allocation5 [shape = 'u8[16384]{0}', space=vmem, size = 0x4000, scoped, tag = 'input window, operand 1, single buffered']
    #allocation6 [shape = 's32[1]{0}', space=sflag, size = 0x4, scoped, tag = 'scoped memory for tpu_custom_call.1']
    #allocation7 [shape = 'u8[196608]{0}', space=vmem, size = 0x30000, scoped, tag = 'input window, operand 3, single buffered']
    #allocation8 [shape = 'u8[196608]{0}', space=vmem, size = 0x30000, scoped, tag = 'input window, operand 4, single buffered']
    #allocation9 [shape = 's32[1]{0}', space=sflag, size = 0x4, scoped, tag = 'scoped memory for tpu_custom_call.1']
    #allocation10 [shape = 'u8[131072]{0}', space=vmem, size = 0x20000, scoped, tag = 'input window, operand 5, single buffered']
    #allocation11 [shape = 'u8[196608]{0}', space=vmem, size = 0x30000, scoped, tag = 'input window, operand 7, single buffered']
    #allocation12 [shape = 's32[1]{0}', space=sflag, size = 0x4, scoped, tag = 'scoped memory for tpu_custom_call.1']
    #allocation13 [shape = 'u8[196608]{0}', space=vmem, size = 0x30000, scoped, tag = 'input window, operand 8, single buffered']
    #allocation14 [shape = 'u8[65536]{0}', space=vmem, size = 0x10000, scoped, tag = 'input window, operand 9, single buffered']
    #allocation15 [shape = 's32[1]{0}', space=sflag, size = 0x4, scoped, tag = 'scoped memory for tpu_custom_call.1']
    #allocation16 [shape = 'u8[8192]{0}', space=vmem, size = 0x2000, scoped, tag = 'input window, operand 11, single buffered']
    #allocation17 [shape = 'u8[8192]{0}', space=vmem, size = 0x2000, scoped, tag = 'output window, operand 0, single buffered']
    #allocation18 [shape = 'u8[24576]{0}', space=vmem, size = 0x6000, scoped, tag = 'output window, operand 1, single buffered']
    #allocation19 [shape = 's32[1]{0}', space=sflag, size = 0x4, scoped, tag = 'scoped memory for tpu_custom_call.1']
    #allocation20 [shape = 'u8[8192]{0}', space=vmem, size = 0x2000, scoped, tag = 'output window, operand 2, single buffered']
    #allocation21 [shape = 'u8[8192]{0}', space=vmem, size = 0x2000, scoped, tag = 'output window, operand 3, single buffered']
    #allocation22 [shape = 's32[1]{0}', space=sflag, size = 0x4, scoped, tag = 'scoped memory for tpu_custom_call.1']
    #allocation23 [shape = 'u8[8192]{0}', space=vmem, size = 0x2000, scoped, tag = 'output window, operand 4, single buffered']
    #allocation24 [shape = 'u8[8192]{0}', space=vmem, size = 0x2000, scoped, tag = 'output window, operand 5, single buffered']
    #allocation25 [shape = 's32[1]{0}', space=sflag, size = 0x4, scoped, tag = 'scoped memory for tpu_custom_call.1']
    %23 = vsyncpa [#allocation3], 0
    %24 = vsyncpa [#allocation6], 0
    %25 = vsyncpa [#allocation9], 0
    %26 = vsyncpa [#allocation12], 0
    %27 = vsyncpa [#allocation15], 0
    %28 = vsyncpa [#allocation4], 0
    %29 = vsyncpa [#allocation19], 0
    %30 = vsyncpa [#allocation22], 0
    %31 = vsyncpa [#allocation25], 0
    // Predicated region
    $region2: #{tpu_custom_call.1} parent=1 // pred_check
      _
    $region3: #{tpu_custom_call.1} parent=1 // pred_check_branch
      %33 = sbr.rel (0) target = $region5
    $region4: #{tpu_custom_call.1} parent=1 // pred_region
      %35 = vsyncadd [#allocation3], 0
      %s36 = sshll.u32 %s0, 4
      %s37 = int_to_ptr.hbm [resolvable:$true] %s36
      %s38 = sshll.u32 [#allocation2], 4
      %s39 = int_to_ptr.vmem [resolvable:$true] %s38
      %44 = dma.hbm_to_vmem [thread:$0]  %s37, 256, %s39, [#allocation3], 128, 128, 8
    $region5: #{tpu_custom_call.1} parent=1 // pred_fallthru
      _
    // Predicated region
    $region6: #{tpu_custom_call.1} parent=1 // pred_check
      _
    $region7: #{tpu_custom_call.1} parent=1 // pred_check_branch
      %46 = sbr.rel (0) target = $region9
    $region8: #{tpu_custom_call.1} parent=1 // pred_region
      %48 = vsyncadd [#allocation6], 0
      %s49 = sshll.u32 %s1, 4
      %s50 = int_to_ptr.hbm [resolvable:$true] %s49
      %s51 = sshll.u32 [#allocation5], 4
      %s52 = int_to_ptr.vmem [resolvable:$true] %s51
      %57 = dma.hbm_to_vmem [thread:$0]  %s50, 512, %s52, [#allocation6], 128, 128, 8
    $region9: #{tpu_custom_call.1} parent=1 // pred_fallthru
      _
    // Predicated region
    $region10: #{tpu_custom_call.1} parent=1 // pred_check
      _
    $region11: #{tpu_custom_call.1} parent=1 // pred_check_branch
      %59 = sbr.rel (0) target = $region13
    $region12: #{tpu_custom_call.1} parent=1 // pred_region
      _
    $region13: #{tpu_custom_call.1} parent=1 // pred_fallthru
      _
    // Predicated region
    $region14: #{tpu_custom_call.1} parent=1 // pred_check
      _
    $region15: #{tpu_custom_call.1} parent=1 // pred_check_branch
      %61 = sbr.rel (0) target = $region17
    $region16: #{tpu_custom_call.1} parent=1 // pred_region
      %63 = vsyncadd [#allocation6], 0
      %s64 = sshll.u32 %s3, 4
      %s65 = int_to_ptr.hbm [resolvable:$true] %s64
      %s66 = sshll.u32 [#allocation7], 4
      %s67 = int_to_ptr.vmem [resolvable:$true] %s66
      %72 = dma.hbm_to_vmem [thread:$0]  %s65, 6144, %s67, [#allocation6], 384, 384, 24
    $region17: #{tpu_custom_call.1} parent=1 // pred_fallthru
      _
    // Predicated region
    $region18: #{tpu_custom_call.1} parent=1 // pred_check
      _
    $region19: #{tpu_custom_call.1} parent=1 // pred_check_branch
      %74 = sbr.rel (0) target = $region21
    $region20: #{tpu_custom_call.1} parent=1 // pred_region
      %76 = vsyncadd [#allocation9], 0
      %s77 = sshll.u32 %s4, 4
      %s78 = int_to_ptr.hbm [resolvable:$true] %s77
      %s79 = sshll.u32 [#allocation8], 4
      %s80 = int_to_ptr.vmem [resolvable:$true] %s79
      %85 = dma.hbm_to_vmem [thread:$0]  %s78, 6144, %s80, [#allocation9], 384, 384, 24
    $region21: #{tpu_custom_call.1} parent=1 // pred_fallthru
      _
    // Predicated region
    $region22: #{tpu_custom_call.1} parent=1 // pred_check
      _
    $region23: #{tpu_custom_call.1} parent=1 // pred_check_branch
      %87 = sbr.rel (0) target = $region25
    $region24: #{tpu_custom_call.1} parent=1 // pred_region
      %89 = vsyncadd [#allocation9], 0
      %s90 = sshll.u32 %s5, 4
      %s91 = int_to_ptr.hbm [resolvable:$true] %s90
      %s92 = sshll.u32 [#allocation10], 4
      %s93 = int_to_ptr.vmem [resolvable:$true] %s92
      %98 = dma.hbm_to_vmem [thread:$0]  %s91, 4096, %s93, [#allocation9], 256, 256, 16
    $region25: #{tpu_custom_call.1} parent=1 // pred_fallthru
      _
    // Predicated region
    $region26: #{tpu_custom_call.1} parent=1 // pred_check
      _
    $region27: #{tpu_custom_call.1} parent=1 // pred_check_branch
      %100 = sbr.rel (0) target = $region29
    $region28: #{tpu_custom_call.1} parent=1 // pred_region
      _
    $region29: #{tpu_custom_call.1} parent=1 // pred_fallthru
      _
    // Predicated region
    $region30: #{tpu_custom_call.1} parent=1 // pred_check
      _
    $region31: #{tpu_custom_call.1} parent=1 // pred_check_branch
      %102 = sbr.rel (0) target = $region33
    $region32: #{tpu_custom_call.1} parent=1 // pred_region
      %104 = vsyncadd [#allocation12], 0
      %s105 = sshll.u32 %s7, 4
      %s106 = int_to_ptr.hbm [resolvable:$true] %s105
      %s107 = sshll.u32 [#allocation11], 4
      %s108 = int_to_ptr.vmem [resolvable:$true] %s107
      %113 = dma.hbm_to_vmem [thread:$0]  %s106, 6144, %s108, [#allocation12], 384, 384, 24
    $region33: #{tpu_custom_call.1} parent=1 // pred_fallthru
      _
    // Predicated region
    $region34: #{tpu_custom_call.1} parent=1 // pred_check
      _
    $region35: #{tpu_custom_call.1} parent=1 // pred_check_branch
      %115 = sbr.rel (0) target = $region37
    $region36: #{tpu_custom_call.1} parent=1 // pred_region
      %117 = vsyncadd [#allocation12], 0
      %s118 = sshll.u32 %s8, 4
      %s119 = int_to_ptr.hbm [resolvable:$true] %s118
      %s120 = sshll.u32 [#allocation13], 4
      %s121 = int_to_ptr.vmem [resolvable:$true] %s120
      %126 = dma.hbm_to_vmem [thread:$0]  %s119, 6144, %s121, [#allocation12], 384, 384, 24
    $region37: #{tpu_custom_call.1} parent=1 // pred_fallthru
      _
    // Predicated region
    $region38: #{tpu_custom_call.1} parent=1 // pred_check
      _
    $region39: #{tpu_custom_call.1} parent=1 // pred_check_branch
      %128 = sbr.rel (0) target = $region41
    $region40: #{tpu_custom_call.1} parent=1 // pred_region
      %130 = vsyncadd [#allocation15], 0
      %s131 = sshll.u32 %s9, 4
      %s132 = int_to_ptr.hbm [resolvable:$true] %s131
      %s133 = sshll.u32 [#allocation14], 4
      %s134 = int_to_ptr.vmem [resolvable:$true] %s133
      %139 = dma.hbm_to_vmem [thread:$0]  %s132, 2048, %s134, [#allocation15], 128, 128, 8
    $region41: #{tpu_custom_call.1} parent=1 // pred_fallthru
      _
    // Predicated region
    $region42: #{tpu_custom_call.1} parent=1 // pred_check
      _
    $region43: #{tpu_custom_call.1} parent=1 // pred_check_branch
      %141 = sbr.rel (0) target = $region45
    $region44: #{tpu_custom_call.1} parent=1 // pred_region
      _
    $region45: #{tpu_custom_call.1} parent=1 // pred_fallthru
      _
    // Predicated region
    $region46: #{tpu_custom_call.1} parent=1 // pred_check
      _
    $region47: #{tpu_custom_call.1} parent=1 // pred_check_branch
      %143 = sbr.rel (0) target = $region49
    $region48: #{tpu_custom_call.1} parent=1 // pred_region
      %145 = vsyncadd [#allocation15], 0
      %s146 = sshll.u32 %s11, 4
      %s147 = int_to_ptr.hbm [resolvable:$true] %s146
      %s148 = sshll.u32 [#allocation16], 4
      %s149 = int_to_ptr.vmem [resolvable:$true] %s148
      %154 = dma.hbm_to_vmem [thread:$0]  %s147, 256, %s149, [#allocation15], 128, 128, 8
    $region49: #{tpu_custom_call.1} parent=1 // pred_fallthru
      _
    // Predicated region
    $region50: #{tpu_custom_call.1} parent=1 // pred_check
      _
    $region51: #{tpu_custom_call.1} parent=1 // pred_check_branch
      %156 = sbr.rel (0) target = $region53
    $region52: #{tpu_custom_call.1} parent=1 // pred_region
      %158 = dma.done [#allocation3], 256
    $region53: #{tpu_custom_call.1} parent=1 // pred_fallthru
      _
    // Predicated region
    $region54: #{tpu_custom_call.1} parent=1 // pred_check
      _
    $region55: #{tpu_custom_call.1} parent=1 // pred_check_branch
      %160 = sbr.rel (0) target = $region57
    $region56: #{tpu_custom_call.1} parent=1 // pred_region
      %162 = dma.done [#allocation6], 512
    $region57: #{tpu_custom_call.1} parent=1 // pred_fallthru
      _
    // Predicated region
    $region58: #{tpu_custom_call.1} parent=1 // pred_check
      _
    $region59: #{tpu_custom_call.1} parent=1 // pred_check_branch
      %164 = sbr.rel (0) target = $region61
    $region60: #{tpu_custom_call.1} parent=1 // pred_region
      %166 = dma.done [#allocation6], 6144
    $region61: #{tpu_custom_call.1} parent=1 // pred_fallthru
      _
    // Predicated region
    $region62: #{tpu_custom_call.1} parent=1 // pred_check
      _
    $region63: #{tpu_custom_call.1} parent=1 // pred_check_branch
      %168 = sbr.rel (0) target = $region65
    $region64: #{tpu_custom_call.1} parent=1 // pred_region
      %170 = dma.done [#allocation9], 6144
    $region65: #{tpu_custom_call.1} parent=1 // pred_fallthru
      _
    // Predicated region
    $region66: #{tpu_custom_call.1} parent=1 // pred_check
      _
    $region67: #{tpu_custom_call.1} parent=1 // pred_check_branch
      %172 = sbr.rel (0) target = $region69
    $region68: #{tpu_custom_call.1} parent=1 // pred_region
      %174 = dma.done [#allocation9], 4096
    $region69: #{tpu_custom_call.1} parent=1 // pred_fallthru
      _
    // Predicated region
    $region70: #{tpu_custom_call.1} parent=1 // pred_check
      _
    $region71: #{tpu_custom_call.1} parent=1 // pred_check_branch
      %176 = sbr.rel (0) target = $region73
    $region72: #{tpu_custom_call.1} parent=1 // pred_region
      %178 = dma.done [#allocation12], 6144
    $region73: #{tpu_custom_call.1} parent=1 // pred_fallthru
      _
    // Predicated region
    $region74: #{tpu_custom_call.1} parent=1 // pred_check
      _
    $region75: #{tpu_custom_call.1} parent=1 // pred_check_branch
      %180 = sbr.rel (0) target = $region77
    $region76: #{tpu_custom_call.1} parent=1 // pred_region
      %182 = dma.done [#allocation12], 6144
    $region77: #{tpu_custom_call.1} parent=1 // pred_fallthru
      _
    // Predicated region
    $region78: #{tpu_custom_call.1} parent=1 // pred_check
      _
    $region79: #{tpu_custom_call.1} parent=1 // pred_check_branch
      %184 = sbr.rel (0) target = $region81
    $region80: #{tpu_custom_call.1} parent=1 // pred_region
      %186 = dma.done [#allocation15], 2048
    $region81: #{tpu_custom_call.1} parent=1 // pred_fallthru
      _
    // Predicated region
    $region82: #{tpu_custom_call.1} parent=1 // pred_check
      _
    $region83: #{tpu_custom_call.1} parent=1 // pred_check_branch
      %188 = sbr.rel (0) target = $region85
    $region84: #{tpu_custom_call.1} parent=1 // pred_region
      %190 = dma.done [#allocation15], 256
    $region85: #{tpu_custom_call.1} parent=1 // pred_fallthru
      _
    %v191 = vld [vmem:[%s10] sm:$0x3]
    %v192 = vld [vmem:[%s10 + $0x2] sm:$0x3]
    %v193 = vunpack.c.0.s8 %v191
    %v194 = vunpack.c.0.s8 %v192
    %vm195 = vcmp.ne.s32.totalorder %v193, 0
    %vm196 = vcmp.ne.s32.totalorder %v194, 0
    %v197 = vsel %vm195, 0.0, -1e+09
    %v198 = vsel %vm196, 0.0, -1e+09
    %v199 = vld [vmem:[#allocation2] sm:$0xff]
    %v200 = vld [vmem:[#allocation2 + $0x8] sm:$0xff]
    %v201 = vld [vmem:[#allocation5] sm:$0xff]
    %v202 = vld [vmem:[#allocation5 + $0x8] sm:$0xff]
    %v203 = vld [vmem:[#allocation5 + $0x10] sm:$0xff]
    %v204 = vld [vmem:[#allocation5 + $0x18] sm:$0xff]
    %v205 = vld [vmem:[%s2] sm:$0x1]
    %v207 = vperm.slane %v205, 0
    %vm209 = vcmask 261120
    %v211 = vsel %vm209, %v199, 0
    %v214 = vsel %vm209, %v200, 0
    %216 = vmatpush.msra.mxu0 0.0
    %217 = vmatpush.msra.mxu0 0.0
    %218 = vmatpush.msra.mxu0 0.0
    %219 = vmatpush.msra.mxu0 0.0
    %220 = vmatpush.msra.mxu0 0.0
    %221 = vmatpush.msra.mxu0 0.0
    %222 = vmatpush.msra.mxu0 0.0
    %223 = vmatpush.msra.mxu0 0.0
    %224 = vmatpush.msra.mxu0 0.0
    %225 = vmatpush.msra.mxu0 0.0
    %226 = vmatpush.msra.mxu0 0.0
    %227 = vmatpush.msra.mxu0 0.0
    %228 = vmatpush.msra.mxu0 %v204
    %229 = vmatpush.msra.mxu0 %v203
    %230 = vmatpush.msra.mxu0 %v202
    %231 = vmatpush.msra.mxu0 %v201
    %232 = vmatmul.f32.gmra.mxu0 %v211
    %v233 = vpop.f32.mrf.mxu0
    %v234 = vadd.f32 %v207, %v233
    %235 = vmatmul.f32.gmra.mxu0 %v214
    %v236 = vpop.f32.mrf.mxu0
    %v237 = vadd.f32 %v207, %v236
    %238 = vdwg.mxu0
    %v239 = vld [vmem:[#allocation7] sm:$0xff]
    %v240 = vld [vmem:[#allocation7 + $0x8] sm:$0xff]
    %v241 = vld [vmem:[#allocation7 + $0x10] sm:$0xff]
    %v242 = vld [vmem:[#allocation7 + $0x18] sm:$0xff]
    %v243 = vld [vmem:[#allocation7 + $0x20] sm:$0xff]
    %v244 = vld [vmem:[#allocation7 + $0x28] sm:$0xff]
    %v245 = vld [vmem:[#allocation7 + $0x30] sm:$0xff]
    %v246 = vld [vmem:[#allocation7 + $0x38] sm:$0xff]
    %v247 = vld [vmem:[#allocation7 + $0x40] sm:$0xff]
    %v248 = vld [vmem:[#allocation7 + $0x48] sm:$0xff]
    %v249 = vld [vmem:[#allocation7 + $0x50] sm:$0xff]
    %v250 = vld [vmem:[#allocation7 + $0x58] sm:$0xff]
    %v251 = vld [vmem:[#allocation7 + $0x60] sm:$0xff]
    %v252 = vld [vmem:[#allocation7 + $0x68] sm:$0xff]
    %v253 = vld [vmem:[#allocation7 + $0x70] sm:$0xff]
    %v254 = vld [vmem:[#allocation7 + $0x78] sm:$0xff]
    %v255 = vld [vmem:[#allocation7 + $0x80] sm:$0xff]
    %v256 = vld [vmem:[#allocation7 + $0x88] sm:$0xff]
    %v257 = vld [vmem:[#allocation7 + $0x90] sm:$0xff]
    %v258 = vld [vmem:[#allocation7 + $0x98] sm:$0xff]
    %v259 = vld [vmem:[#allocation7 + $0xa0] sm:$0xff]
    %v260 = vld [vmem:[#allocation7 + $0xa8] sm:$0xff]
    %v261 = vld [vmem:[#allocation7 + $0xb0] sm:$0xff]
    %v262 = vld [vmem:[#allocation7 + $0xb8] sm:$0xff]
    %v263 = vld [vmem:[#allocation7 + $0xc0] sm:$0xff]
    %v264 = vld [vmem:[#allocation7 + $0xc8] sm:$0xff]
    %v265 = vld [vmem:[#allocation7 + $0xd0] sm:$0xff]
    %v266 = vld [vmem:[#allocation7 + $0xd8] sm:$0xff]
    %v267 = vld [vmem:[#allocation7 + $0xe0] sm:$0xff]
    %v268 = vld [vmem:[#allocation7 + $0xe8] sm:$0xff]
    %v269 = vld [vmem:[#allocation7 + $0xf0] sm:$0xff]
    %v270 = vld [vmem:[#allocation7 + $0xf8] sm:$0xff]
    %v271 = vld [vmem:[#allocation7 + $0x100] sm:$0xff]
    %v272 = vld [vmem:[#allocation7 + $0x108] sm:$0xff]
    %v273 = vld [vmem:[#allocation7 + $0x110] sm:$0xff]
    %v274 = vld [vmem:[#allocation7 + $0x118] sm:$0xff]
    %v275 = vld [vmem:[#allocation7 + $0x120] sm:$0xff]
    %v276 = vld [vmem:[#allocation7 + $0x128] sm:$0xff]
    %v277 = vld [vmem:[#allocation7 + $0x130] sm:$0xff]
    %v278 = vld [vmem:[#allocation7 + $0x138] sm:$0xff]
    %v279 = vld [vmem:[#allocation7 + $0x140] sm:$0xff]
    %v280 = vld [vmem:[#allocation7 + $0x148] sm:$0xff]
    %v281 = vld [vmem:[#allocation7 + $0x150] sm:$0xff]
    %v282 = vld [vmem:[#allocation7 + $0x158] sm:$0xff]
    %v283 = vld [vmem:[#allocation7 + $0x160] sm:$0xff]
    %v284 = vld [vmem:[#allocation7 + $0x168] sm:$0xff]
    %v285 = vld [vmem:[#allocation7 + $0x170] sm:$0xff]
    %v286 = vld [vmem:[#allocation7 + $0x178] sm:$0xff]
    %287 = vmatpush.msra.mxu0 %v284
    %288 = vmatpush.msra.mxu0 %v281
    %289 = vmatpush.msra.mxu0 %v278
    %290 = vmatpush.msra.mxu0 %v275
    %291 = vmatpush.msra.mxu0 %v272
    %292 = vmatpush.msra.mxu0 %v269
    %293 = vmatpush.msra.mxu0 %v266
    %294 = vmatpush.msra.mxu0 %v263
    %295 = vmatpush.msra.mxu0 %v260
    %296 = vmatpush.msra.mxu0 %v257
    %297 = vmatpush.msra.mxu0 %v254
    %298 = vmatpush.msra.mxu0 %v251
    %299 = vmatpush.msra.mxu0 %v248
    %300 = vmatpush.msra.mxu0 %v245
    %301 = vmatpush.msra.mxu0 %v242
    %302 = vmatpush.msra.mxu0 %v239
    %303 = vmatmul.f32.gmra.mxu0 %v234
    %v304 = vpop.f32.mrf.mxu0
    %v305 = vadd.f32 0.0, %v304
    %306 = vmatmul.f32.gmra.mxu0 %v237
    %v307 = vpop.f32.mrf.mxu0
    %v308 = vadd.f32 0.0, %v307
    %309 = vdwg.mxu0
    %310 = vmatpush.msra.mxu0 %v285
    %311 = vmatpush.msra.mxu0 %v282
    %312 = vmatpush.msra.mxu0 %v279
    %313 = vmatpush.msra.mxu0 %v276
    %314 = vmatpush.msra.mxu0 %v273
    %315 = vmatpush.msra.mxu0 %v270
    %316 = vmatpush.msra.mxu0 %v267
    %317 = vmatpush.msra.mxu0 %v264
    %318 = vmatpush.msra.mxu0 %v261
    %319 = vmatpush.msra.mxu0 %v258
    %320 = vmatpush.msra.mxu0 %v255
    %321 = vmatpush.msra.mxu0 %v252
    %322 = vmatpush.msra.mxu0 %v249
    %323 = vmatpush.msra.mxu0 %v246
    %324 = vmatpush.msra.mxu0 %v243
    %325 = vmatpush.msra.mxu0 %v240
    %326 = vmatmul.f32.gmra.mxu0 %v234
    %v327 = vpop.f32.mrf.mxu0
    %v328 = vadd.f32 0.0, %v327
    %329 = vmatmul.f32.gmra.mxu0 %v237
    %v330 = vpop.f32.mrf.mxu0
    %v331 = vadd.f32 0.0, %v330
    %332 = vdwg.mxu0
    %333 = vmatpush.msra.mxu0 %v286
    %334 = vmatpush.msra.mxu0 %v283
    %335 = vmatpush.msra.mxu0 %v280
    %336 = vmatpush.msra.mxu0 %v277
    %337 = vmatpush.msra.mxu0 %v274
    %338 = vmatpush.msra.mxu0 %v271
    %339 = vmatpush.msra.mxu0 %v268
    %340 = vmatpush.msra.mxu0 %v265
    %341 = vmatpush.msra.mxu0 %v262
    %342 = vmatpush.msra.mxu0 %v259
    %343 = vmatpush.msra.mxu0 %v256
    %344 = vmatpush.msra.mxu0 %v253
    %345 = vmatpush.msra.mxu0 %v250
    %346 = vmatpush.msra.mxu0 %v247
    %347 = vmatpush.msra.mxu0 %v244
    %348 = vmatpush.msra.mxu0 %v241
    %349 = vmatmul.f32.gmra.mxu0 %v234
    %v350 = vpop.f32.mrf.mxu0
    %v351 = vadd.f32 0.0, %v350
    %352 = vmatmul.f32.gmra.mxu0 %v237
    %v353 = vpop.f32.mrf.mxu0
    %v354 = vadd.f32 0.0, %v353
    %355 = vdwg.mxu0
    %356 = vmatpush.xpose.msra.mxu0 0.0
    %357 = vmatpush.xpose.msra.mxu0 0.0
    %358 = vmatpush.xpose.msra.mxu0 0.0
    %359 = vmatpush.xpose.msra.mxu0 0.0
    %360 = vmatpush.xpose.msra.mxu0 0.0
    %361 = vmatpush.xpose.msra.mxu0 0.0
    %362 = vmatpush.xpose.msra.mxu0 0.0
    %363 = vmatpush.xpose.msra.mxu0 0.0
    %364 = vmatpush.xpose.msra.mxu0 0.0
    %365 = vmatpush.xpose.msra.mxu0 0.0
    %366 = vmatpush.xpose.msra.mxu0 0.0
    %367 = vmatpush.xpose.msra.mxu0 0.0
    %368 = vmatpush.xpose.msra.mxu0 0.0
    %369 = vmatpush.xpose.msra.mxu0 0.0
    %370 = vmatpush.xpose.msra.mxu0 %v331
    %371 = vmatpush.xpose.msra.mxu0 %v328
    %372 = vmatmul.f32.gmra.mxu0 %v305
    %v373 = vpop.f32.mrf.mxu0
    %v374 = vadd.f32 %v197, %v373
    %375 = vmatmul.f32.gmra.mxu0 %v308
    %v376 = vpop.f32.mrf.mxu0
    %v377 = vadd.f32 %v198, %v376
    %378 = vdwg.mxu0
    %vm379 = vcmask 130048
    %v380 = vsel %vm379, %v374, -inf
    %381 = vmax.xlane.f32.xlu0 %v380
    %v382 = vpop.xlane.xlu0 %381
    %v383 = vsel %vm379, %v377, -inf
    %384 = vmax.xlane.f32.xlu0 %v383
    %v385 = vpop.xlane.xlu0 %384
    %v386 = vsub.f32 %v374, %v382
    %v387 = vsub.f32 %v377, %v385
    %v388 = vmul.f32 %v386, 1.442695
    %v389 = vpow.pop %v388
    %v390 = vmul.f32 %v387, 1.442695
    %v391 = vpow.pop %v390
    %v392 = vsel %vm379, %v389, 0.0
    %393 = vadd.xlane.f32.xlu0 %v392
    %v394 = vpop.xlane.xlu0 %393
    %v395 = vsel %vm379, %v391, 0.0
    %396 = vadd.xlane.f32.xlu0 %v395
    %v397 = vpop.xlane.xlu0 %396
    %v398 = vrcp.pop %v394
    %v399 = vmul.f32 %v394, %v398
    %v400 = vsub.f32 1.0, %v399
    %v401 = vmul.f32 %v398, %v400
    %v402 = vadd.f32 %v398, %v401
    %vm403 = vweird.f32 %v394
    %vm404 = vweird.f32 %v398
    %vm405 = vmor %vm403, %vm404
    %v406 = vsel %vm405, %v398, %v402
    %v407 = vand.u32 2147483647, %v394
    %vm408 = vcmp.eq.f32.partialorder %v407, 8.507059e+37
    %v409 = vand.u32 %v394, 2147483648
    %v410 = vor.u32 1.1754944e-38, %v409
    %v411 = vsel %vm408, %v410, %v406
    %v412 = vrcp.pop %v397
    %v413 = vmul.f32 %v397, %v412
    %v414 = vsub.f32 1.0, %v413
    %v415 = vmul.f32 %v412, %v414
    %v416 = vadd.f32 %v412, %v415
    %vm417 = vweird.f32 %v397
    %vm418 = vweird.f32 %v412
    %vm419 = vmor %vm417, %vm418
    %v420 = vsel %vm419, %v412, %v416
    %v421 = vand.u32 2147483647, %v397
    %vm422 = vcmp.eq.f32.partialorder %v421, 8.507059e+37
    %v423 = vand.u32 %v397, 2147483648
    %v424 = vor.u32 1.1754944e-38, %v423
    %v425 = vsel %vm422, %v424, %v420
    %v426 = vmul.f32 %v389, %v411
    %v427 = vmul.f32 %v391, %v425
    %v429 = vsel %vm379, %v426, 0
    %v432 = vsel %vm379, %v427, 0
    %434 = vmatpush.msra.mxu0 0.0
    %435 = vmatpush.msra.mxu0 0.0
    %436 = vmatpush.msra.mxu0 0.0
    %437 = vmatpush.msra.mxu0 0.0
    %438 = vmatpush.msra.mxu0 0.0
    %439 = vmatpush.msra.mxu0 0.0
    %440 = vmatpush.msra.mxu0 0.0
    %441 = vmatpush.msra.mxu0 0.0
    %442 = vmatpush.msra.mxu0 0.0
    %443 = vmatpush.msra.mxu0 0.0
    %444 = vmatpush.msra.mxu0 0.0
    %445 = vmatpush.msra.mxu0 0.0
    %446 = vmatpush.msra.mxu0 0.0
    %447 = vmatpush.msra.mxu0 0.0
    %448 = vmatpush.msra.mxu0 %v354
    %449 = vmatpush.msra.mxu0 %v351
    %450 = vmatmul.f32.gmra.mxu0 %v429
    %v451 = vpop.f32.mrf.mxu0
    %v452 = vadd.f32 0.0, %v451
    %453 = vmatmul.f32.gmra.mxu0 %v432
    %v454 = vpop.f32.mrf.mxu0
    %v455 = vadd.f32 0.0, %v454
    %456 = vdwg.mxu0
    %v457 = vld [vmem:[#allocation8] sm:$0xff]
    %v458 = vld [vmem:[#allocation8 + $0x8] sm:$0xff]
    %v459 = vld [vmem:[#allocation8 + $0x10] sm:$0xff]
    %v460 = vld [vmem:[#allocation8 + $0x18] sm:$0xff]
    %v461 = vld [vmem:[#allocation8 + $0x20] sm:$0xff]
    %v462 = vld [vmem:[#allocation8 + $0x28] sm:$0xff]
    %v463 = vld [vmem:[#allocation8 + $0x30] sm:$0xff]
    %v464 = vld [vmem:[#allocation8 + $0x38] sm:$0xff]
    %v465 = vld [vmem:[#allocation8 + $0x40] sm:$0xff]
    %v466 = vld [vmem:[#allocation8 + $0x48] sm:$0xff]
    %v467 = vld [vmem:[#allocation8 + $0x50] sm:$0xff]
    %v468 = vld [vmem:[#allocation8 + $0x58] sm:$0xff]
    %v469 = vld [vmem:[#allocation8 + $0x60] sm:$0xff]
    %v470 = vld [vmem:[#allocation8 + $0x68] sm:$0xff]
    %v471 = vld [vmem:[#allocation8 + $0x70] sm:$0xff]
    %v472 = vld [vmem:[#allocation8 + $0x78] sm:$0xff]
    %v473 = vld [vmem:[#allocation8 + $0x80] sm:$0xff]
    %v474 = vld [vmem:[#allocation8 + $0x88] sm:$0xff]
    %v475 = vld [vmem:[#allocation8 + $0x90] sm:$0xff]
    %v476 = vld [vmem:[#allocation8 + $0x98] sm:$0xff]
    %v477 = vld [vmem:[#allocation8 + $0xa0] sm:$0xff]
    %v478 = vld [vmem:[#allocation8 + $0xa8] sm:$0xff]
    %v479 = vld [vmem:[#allocation8 + $0xb0] sm:$0xff]
    %v480 = vld [vmem:[#allocation8 + $0xb8] sm:$0xff]
    %v481 = vld [vmem:[#allocation8 + $0xc0] sm:$0xff]
    %v482 = vld [vmem:[#allocation8 + $0xc8] sm:$0xff]
    %v483 = vld [vmem:[#allocation8 + $0xd0] sm:$0xff]
    %v484 = vld [vmem:[#allocation8 + $0xd8] sm:$0xff]
    %v485 = vld [vmem:[#allocation8 + $0xe0] sm:$0xff]
    %v486 = vld [vmem:[#allocation8 + $0xe8] sm:$0xff]
    %v487 = vld [vmem:[#allocation8 + $0xf0] sm:$0xff]
    %v488 = vld [vmem:[#allocation8 + $0xf8] sm:$0xff]
    %v489 = vld [vmem:[#allocation8 + $0x100] sm:$0xff]
    %v490 = vld [vmem:[#allocation8 + $0x108] sm:$0xff]
    %v491 = vld [vmem:[#allocation8 + $0x110] sm:$0xff]
    %v492 = vld [vmem:[#allocation8 + $0x118] sm:$0xff]
    %v493 = vld [vmem:[#allocation8 + $0x120] sm:$0xff]
    %v494 = vld [vmem:[#allocation8 + $0x128] sm:$0xff]
    %v495 = vld [vmem:[#allocation8 + $0x130] sm:$0xff]
    %v496 = vld [vmem:[#allocation8 + $0x138] sm:$0xff]
    %v497 = vld [vmem:[#allocation8 + $0x140] sm:$0xff]
    %v498 = vld [vmem:[#allocation8 + $0x148] sm:$0xff]
    %v499 = vld [vmem:[#allocation8 + $0x150] sm:$0xff]
    %v500 = vld [vmem:[#allocation8 + $0x158] sm:$0xff]
    %v501 = vld [vmem:[#allocation8 + $0x160] sm:$0xff]
    %v502 = vld [vmem:[#allocation8 + $0x168] sm:$0xff]
    %v503 = vld [vmem:[#allocation8 + $0x170] sm:$0xff]
    %v504 = vld [vmem:[#allocation8 + $0x178] sm:$0xff]
    %505 = vmatpush.msra.mxu0 %v502
    %506 = vmatpush.msra.mxu0 %v499
    %507 = vmatpush.msra.mxu0 %v496
    %508 = vmatpush.msra.mxu0 %v493
    %509 = vmatpush.msra.mxu0 %v490
    %510 = vmatpush.msra.mxu0 %v487
    %511 = vmatpush.msra.mxu0 %v484
    %512 = vmatpush.msra.mxu0 %v481
    %513 = vmatpush.msra.mxu0 %v478
    %514 = vmatpush.msra.mxu0 %v475
    %515 = vmatpush.msra.mxu0 %v472
    %516 = vmatpush.msra.mxu0 %v469
    %517 = vmatpush.msra.mxu0 %v466
    %518 = vmatpush.msra.mxu0 %v463
    %519 = vmatpush.msra.mxu0 %v460
    %520 = vmatpush.msra.mxu0 %v457
    %521 = vmatmul.f32.gmra.mxu0 %v452
    %v522 = vpop.f32.mrf.mxu0
    %v523 = vadd.f32 0.0, %v522
    %524 = vmatmul.f32.gmra.mxu0 %v455
    %v525 = vpop.f32.mrf.mxu0
    %v526 = vadd.f32 0.0, %v525
    %527 = vdwg.mxu0
    %528 = vmatpush.msra.mxu0 %v503
    %529 = vmatpush.msra.mxu0 %v500
    %530 = vmatpush.msra.mxu0 %v497
    %531 = vmatpush.msra.mxu0 %v494
    %532 = vmatpush.msra.mxu0 %v491
    %533 = vmatpush.msra.mxu0 %v488
    %534 = vmatpush.msra.mxu0 %v485
    %535 = vmatpush.msra.mxu0 %v482
    %536 = vmatpush.msra.mxu0 %v479
    %537 = vmatpush.msra.mxu0 %v476
    %538 = vmatpush.msra.mxu0 %v473
    %539 = vmatpush.msra.mxu0 %v470
    %540 = vmatpush.msra.mxu0 %v467
    %541 = vmatpush.msra.mxu0 %v464
    %542 = vmatpush.msra.mxu0 %v461
    %543 = vmatpush.msra.mxu0 %v458
    %544 = vmatmul.f32.gmra.mxu0 %v452
    %v545 = vpop.f32.mrf.mxu0
    %v546 = vadd.f32 0.0, %v545
    %547 = vmatmul.f32.gmra.mxu0 %v455
    %v548 = vpop.f32.mrf.mxu0
    %v549 = vadd.f32 0.0, %v548
    %550 = vdwg.mxu0
    %551 = vmatpush.msra.mxu0 %v504
    %552 = vmatpush.msra.mxu0 %v501
    %553 = vmatpush.msra.mxu0 %v498
    %554 = vmatpush.msra.mxu0 %v495
    %555 = vmatpush.msra.mxu0 %v492
    %556 = vmatpush.msra.mxu0 %v489
    %557 = vmatpush.msra.mxu0 %v486
    %558 = vmatpush.msra.mxu0 %v483
    %559 = vmatpush.msra.mxu0 %v480
    %560 = vmatpush.msra.mxu0 %v477
    %561 = vmatpush.msra.mxu0 %v474
    %562 = vmatpush.msra.mxu0 %v471
    %563 = vmatpush.msra.mxu0 %v468
    %564 = vmatpush.msra.mxu0 %v465
    %565 = vmatpush.msra.mxu0 %v462
    %566 = vmatpush.msra.mxu0 %v459
    %567 = vmatmul.f32.gmra.mxu0 %v452
    %v568 = vpop.f32.mrf.mxu0
    %v569 = vadd.f32 0.0, %v568
    %570 = vmatmul.f32.gmra.mxu0 %v455
    %v571 = vpop.f32.mrf.mxu0
    %v572 = vadd.f32 0.0, %v571
    %573 = vdwg.mxu0
    %574 = vmatpush.xpose.msra.mxu0 0.0
    %575 = vmatpush.xpose.msra.mxu0 0.0
    %576 = vmatpush.xpose.msra.mxu0 0.0
    %577 = vmatpush.xpose.msra.mxu0 0.0
    %578 = vmatpush.xpose.msra.mxu0 0.0
    %579 = vmatpush.xpose.msra.mxu0 0.0
    %580 = vmatpush.xpose.msra.mxu0 0.0
    %581 = vmatpush.xpose.msra.mxu0 0.0
    %582 = vmatpush.xpose.msra.mxu0 0.0
    %583 = vmatpush.xpose.msra.mxu0 0.0
    %584 = vmatpush.xpose.msra.mxu0 0.0
    %585 = vmatpush.xpose.msra.mxu0 0.0
    %586 = vmatpush.xpose.msra.mxu0 0.0
    %587 = vmatpush.xpose.msra.mxu0 0.0
    %588 = vmatpush.xpose.msra.mxu0 %v549
    %589 = vmatpush.xpose.msra.mxu0 %v546
    %590 = vmatmul.f32.gmra.mxu0 %v523
    %v591 = vpop.f32.mrf.mxu0
    %v592 = vadd.f32 %v197, %v591
    %593 = vmatmul.f32.gmra.mxu0 %v526
    %v594 = vpop.f32.mrf.mxu0
    %v595 = vadd.f32 %v198, %v594
    %596 = vdwg.mxu0
    %v597 = vsel %vm379, %v592, -inf
    %598 = vmax.xlane.f32.xlu0 %v597
    %v599 = vpop.xlane.xlu0 %598
    %v600 = vsel %vm379, %v595, -inf
    %601 = vmax.xlane.f32.xlu0 %v600
    %v602 = vpop.xlane.xlu0 %601
    %v603 = vsub.f32 %v592, %v599
    %v604 = vsub.f32 %v595, %v602
    %v605 = vmul.f32 %v603, 1.442695
    %v606 = vpow.pop %v605
    %v607 = vmul.f32 %v604, 1.442695
    %v608 = vpow.pop %v607
    %v609 = vsel %vm379, %v606, 0.0
    %610 = vadd.xlane.f32.xlu0 %v609
    %v611 = vpop.xlane.xlu0 %610
    %v612 = vsel %vm379, %v608, 0.0
    %613 = vadd.xlane.f32.xlu0 %v612
    %v614 = vpop.xlane.xlu0 %613
    %v615 = vrcp.pop %v611
    %v616 = vmul.f32 %v611, %v615
    %v617 = vsub.f32 1.0, %v616
    %v618 = vmul.f32 %v615, %v617
    %v619 = vadd.f32 %v615, %v618
    %vm620 = vweird.f32 %v611
    %vm621 = vweird.f32 %v615
    %vm622 = vmor %vm620, %vm621
    %v623 = vsel %vm622, %v615, %v619
    %v624 = vand.u32 2147483647, %v611
    %vm625 = vcmp.eq.f32.partialorder %v624, 8.507059e+37
    %v626 = vand.u32 %v611, 2147483648
    %v627 = vor.u32 1.1754944e-38, %v626
    %v628 = vsel %vm625, %v627, %v623
    %v629 = vrcp.pop %v614
    %v630 = vmul.f32 %v614, %v629
    %v631 = vsub.f32 1.0, %v630
    %v632 = vmul.f32 %v629, %v631
    %v633 = vadd.f32 %v629, %v632
    %vm634 = vweird.f32 %v614
    %vm635 = vweird.f32 %v629
    %vm636 = vmor %vm634, %vm635
    %v637 = vsel %vm636, %v629, %v633
    %v638 = vand.u32 2147483647, %v614
    %vm639 = vcmp.eq.f32.partialorder %v638, 8.507059e+37
    %v640 = vand.u32 %v614, 2147483648
    %v641 = vor.u32 1.1754944e-38, %v640
    %v642 = vsel %vm639, %v641, %v637
    %v643 = vmul.f32 %v606, %v628
    %v644 = vmul.f32 %v608, %v642
    %v646 = vsel %vm379, %v643, 0
    %v649 = vsel %vm379, %v644, 0
    %651 = vmatpush.msra.mxu0 0.0
    %652 = vmatpush.msra.mxu0 0.0
    %653 = vmatpush.msra.mxu0 0.0
    %654 = vmatpush.msra.mxu0 0.0
    %655 = vmatpush.msra.mxu0 0.0
    %656 = vmatpush.msra.mxu0 0.0
    %657 = vmatpush.msra.mxu0 0.0
    %658 = vmatpush.msra.mxu0 0.0
    %659 = vmatpush.msra.mxu0 0.0
    %660 = vmatpush.msra.mxu0 0.0
    %661 = vmatpush.msra.mxu0 0.0
    %662 = vmatpush.msra.mxu0 0.0
    %663 = vmatpush.msra.mxu0 0.0
    %664 = vmatpush.msra.mxu0 0.0
    %665 = vmatpush.msra.mxu0 %v572
    %666 = vmatpush.msra.mxu0 %v569
    %667 = vmatmul.f32.gmra.mxu0 %v646
    %v668 = vpop.f32.mrf.mxu0
    %v669 = vadd.f32 0.0, %v668
    %670 = vmatmul.f32.gmra.mxu0 %v649
    %v671 = vpop.f32.mrf.mxu0
    %v672 = vadd.f32 0.0, %v671
    %673 = vdwg.mxu0
    %v674 = vld [vmem:[#allocation10] sm:$0xff]
    %v675 = vld [vmem:[#allocation10 + $0x8] sm:$0xff]
    %v676 = vld [vmem:[#allocation10 + $0x10] sm:$0xff]
    %v677 = vld [vmem:[#allocation10 + $0x18] sm:$0xff]
    %v678 = vld [vmem:[#allocation10 + $0x20] sm:$0xff]
    %v679 = vld [vmem:[#allocation10 + $0x28] sm:$0xff]
    %v680 = vld [vmem:[#allocation10 + $0x30] sm:$0xff]
    %v681 = vld [vmem:[#allocation10 + $0x38] sm:$0xff]
    %v682 = vld [vmem:[#allocation10 + $0x40] sm:$0xff]
    %v683 = vld [vmem:[#allocation10 + $0x48] sm:$0xff]
    %v684 = vld [vmem:[#allocation10 + $0x50] sm:$0xff]
    %v685 = vld [vmem:[#allocation10 + $0x58] sm:$0xff]
    %v686 = vld [vmem:[#allocation10 + $0x60] sm:$0xff]
    %v687 = vld [vmem:[#allocation10 + $0x68] sm:$0xff]
    %v688 = vld [vmem:[#allocation10 + $0x70] sm:$0xff]
    %v689 = vld [vmem:[#allocation10 + $0x78] sm:$0xff]
    %v690 = vld [vmem:[#allocation10 + $0x80] sm:$0xff]
    %v691 = vld [vmem:[#allocation10 + $0x88] sm:$0xff]
    %v692 = vld [vmem:[#allocation10 + $0x90] sm:$0xff]
    %v693 = vld [vmem:[#allocation10 + $0x98] sm:$0xff]
    %v694 = vld [vmem:[#allocation10 + $0xa0] sm:$0xff]
    %v695 = vld [vmem:[#allocation10 + $0xa8] sm:$0xff]
    %v696 = vld [vmem:[#allocation10 + $0xb0] sm:$0xff]
    %v697 = vld [vmem:[#allocation10 + $0xb8] sm:$0xff]
    %v698 = vld [vmem:[#allocation10 + $0xc0] sm:$0xff]
    %v699 = vld [vmem:[#allocation10 + $0xc8] sm:$0xff]
    %v700 = vld [vmem:[#allocation10 + $0xd0] sm:$0xff]
    %v701 = vld [vmem:[#allocation10 + $0xd8] sm:$0xff]
    %v702 = vld [vmem:[#allocation10 + $0xe0] sm:$0xff]
    %v703 = vld [vmem:[#allocation10 + $0xe8] sm:$0xff]
    %v704 = vld [vmem:[#allocation10 + $0xf0] sm:$0xff]
    %v705 = vld [vmem:[#allocation10 + $0xf8] sm:$0xff]
    %v706 = vld [vmem:[%s6] sm:$0x3]
    %v708 = vperm.slane %v706, 0
    %v709 = vperm.slane %v706, 1
    %712 = vmatpush.msra.mxu0 %v704
    %713 = vmatpush.msra.mxu0 %v702
    %714 = vmatpush.msra.mxu0 %v700
    %715 = vmatpush.msra.mxu0 %v698
    %716 = vmatpush.msra.mxu0 %v696
    %717 = vmatpush.msra.mxu0 %v694
    %718 = vmatpush.msra.mxu0 %v692
    %719 = vmatpush.msra.mxu0 %v690
    %720 = vmatpush.msra.mxu0 %v688
    %721 = vmatpush.msra.mxu0 %v686
    %722 = vmatpush.msra.mxu0 %v684
    %723 = vmatpush.msra.mxu0 %v682
    %724 = vmatpush.msra.mxu0 %v680
    %725 = vmatpush.msra.mxu0 %v678
    %726 = vmatpush.msra.mxu0 %v676
    %727 = vmatpush.msra.mxu0 %v674
    %728 = vmatmul.f32.gmra.mxu0 %v669
    %v729 = vpop.f32.mrf.mxu0
    %v730 = vadd.f32 %v708, %v729
    %731 = vmatmul.f32.gmra.mxu0 %v672
    %v732 = vpop.f32.mrf.mxu0
    %v733 = vadd.f32 %v708, %v732
    %734 = vdwg.mxu0
    %735 = vmatpush.msra.mxu0 %v705
    %736 = vmatpush.msra.mxu0 %v703
    %737 = vmatpush.msra.mxu0 %v701
    %738 = vmatpush.msra.mxu0 %v699
    %739 = vmatpush.msra.mxu0 %v697
    %740 = vmatpush.msra.mxu0 %v695
    %741 = vmatpush.msra.mxu0 %v693
    %742 = vmatpush.msra.mxu0 %v691
    %743 = vmatpush.msra.mxu0 %v689
    %744 = vmatpush.msra.mxu0 %v687
    %745 = vmatpush.msra.mxu0 %v685
    %746 = vmatpush.msra.mxu0 %v683
    %747 = vmatpush.msra.mxu0 %v681
    %748 = vmatpush.msra.mxu0 %v679
    %749 = vmatpush.msra.mxu0 %v677
    %750 = vmatpush.msra.mxu0 %v675
    %751 = vmatmul.f32.gmra.mxu0 %v669
    %v752 = vpop.f32.mrf.mxu0
    %v753 = vadd.f32 %v709, %v752
    %754 = vmatmul.f32.gmra.mxu0 %v672
    %v755 = vpop.f32.mrf.mxu0
    %v756 = vadd.f32 %v709, %v755
    %757 = vdwg.mxu0
    %v758 = vld [vmem:[#allocation16] sm:$0xff]
    %v759 = vld [vmem:[#allocation16 + $0x8] sm:$0xff]
    %v760 = vmul.f32 %v753, 0.5
    %v761 = vmul.f32 %v756, 0.5
    %v762 = vmul.f32 %v760, 1.442695
    %v763 = vpow.pop %v762
    %v764 = vmul.f32 %v761, 1.442695
    %v765 = vpow.pop %v764
    %v766 = vmul.f32 %v758, %v763
    %v767 = vmul.f32 %v759, %v765
    %v768 = vadd.f32 %v766, %v730
    %v769 = vadd.f32 %v767, %v733
    %770 = vst [vmem:[#allocation18] sm:$0xff] %v730
    %771 = vst [vmem:[#allocation18 + $0x18] sm:$0xff] %v733
    %772 = vst [vmem:[#allocation18 + $0x8] sm:$0xff] %v753
    %773 = vst [vmem:[#allocation18 + $0x20] sm:$0xff] %v756
    %774 = vst [vmem:[#allocation18 + $0x10] sm:$0xff] %v768
    %775 = vst [vmem:[#allocation18 + $0x28] sm:$0xff] %v769
    %v776 = vld [vmem:[#allocation11] sm:$0xff]
    %v777 = vld [vmem:[#allocation11 + $0x8] sm:$0xff]
    %v778 = vld [vmem:[#allocation11 + $0x10] sm:$0xff]
    %v779 = vld [vmem:[#allocation11 + $0x18] sm:$0xff]
    %v780 = vld [vmem:[#allocation11 + $0x20] sm:$0xff]
    %v781 = vld [vmem:[#allocation11 + $0x28] sm:$0xff]
    %v782 = vld [vmem:[#allocation11 + $0x30] sm:$0xff]
    %v783 = vld [vmem:[#allocation11 + $0x38] sm:$0xff]
    %v784 = vld [vmem:[#allocation11 + $0x40] sm:$0xff]
    %v785 = vld [vmem:[#allocation11 + $0x48] sm:$0xff]
    %v786 = vld [vmem:[#allocation11 + $0x50] sm:$0xff]
    %v787 = vld [vmem:[#allocation11 + $0x58] sm:$0xff]
    %v788 = vld [vmem:[#allocation11 + $0x60] sm:$0xff]
    %v789 = vld [vmem:[#allocation11 + $0x68] sm:$0xff]
    %v790 = vld [vmem:[#allocation11 + $0x70] sm:$0xff]
    %v791 = vld [vmem:[#allocation11 + $0x78] sm:$0xff]
    %v792 = vld [vmem:[#allocation11 + $0x80] sm:$0xff]
    %v793 = vld [vmem:[#allocation11 + $0x88] sm:$0xff]
    %v794 = vld [vmem:[#allocation11 + $0x90] sm:$0xff]
    %v795 = vld [vmem:[#allocation11 + $0x98] sm:$0xff]
    %v796 = vld [vmem:[#allocation11 + $0xa0] sm:$0xff]
    %v797 = vld [vmem:[#allocation11 + $0xa8] sm:$0xff]
    %v798 = vld [vmem:[#allocation11 + $0xb0] sm:$0xff]
    %v799 = vld [vmem:[#allocation11 + $0xb8] sm:$0xff]
    %v800 = vld [vmem:[#allocation11 + $0xc0] sm:$0xff]
    %v801 = vld [vmem:[#allocation11 + $0xc8] sm:$0xff]
    %v802 = vld [vmem:[#allocation11 + $0xd0] sm:$0xff]
    %v803 = vld [vmem:[#allocation11 + $0xd8] sm:$0xff]
    %v804 = vld [vmem:[#allocation11 + $0xe0] sm:$0xff]
    %v805 = vld [vmem:[#allocation11 + $0xe8] sm:$0xff]
    %v806 = vld [vmem:[#allocation11 + $0xf0] sm:$0xff]
    %v807 = vld [vmem:[#allocation11 + $0xf8] sm:$0xff]
    %v808 = vld [vmem:[#allocation11 + $0x100] sm:$0xff]
    %v809 = vld [vmem:[#allocation11 + $0x108] sm:$0xff]
    %v810 = vld [vmem:[#allocation11 + $0x110] sm:$0xff]
    %v811 = vld [vmem:[#allocation11 + $0x118] sm:$0xff]
    %v812 = vld [vmem:[#allocation11 + $0x120] sm:$0xff]
    %v813 = vld [vmem:[#allocation11 + $0x128] sm:$0xff]
    %v814 = vld [vmem:[#allocation11 + $0x130] sm:$0xff]
    %v815 = vld [vmem:[#allocation11 + $0x138] sm:$0xff]
    %v816 = vld [vmem:[#allocation11 + $0x140] sm:$0xff]
    %v817 = vld [vmem:[#allocation11 + $0x148] sm:$0xff]
    %v818 = vld [vmem:[#allocation11 + $0x150] sm:$0xff]
    %v819 = vld [vmem:[#allocation11 + $0x158] sm:$0xff]
    %v820 = vld [vmem:[#allocation11 + $0x160] sm:$0xff]
    %v821 = vld [vmem:[#allocation11 + $0x168] sm:$0xff]
    %v822 = vld [vmem:[#allocation11 + $0x170] sm:$0xff]
    %v823 = vld [vmem:[#allocation11 + $0x178] sm:$0xff]
    %824 = vmatpush.msra.mxu0 %v821
    %825 = vmatpush.msra.mxu0 %v818
    %826 = vmatpush.msra.mxu0 %v815
    %827 = vmatpush.msra.mxu0 %v812
    %828 = vmatpush.msra.mxu0 %v809
    %829 = vmatpush.msra.mxu0 %v806
    %830 = vmatpush.msra.mxu0 %v803
    %831 = vmatpush.msra.mxu0 %v800
    %832 = vmatpush.msra.mxu0 %v797
    %833 = vmatpush.msra.mxu0 %v794
    %834 = vmatpush.msra.mxu0 %v791
    %835 = vmatpush.msra.mxu0 %v788
    %836 = vmatpush.msra.mxu0 %v785
    %837 = vmatpush.msra.mxu0 %v782
    %838 = vmatpush.msra.mxu0 %v779
    %839 = vmatpush.msra.mxu0 %v776
    %840 = vmatmul.f32.gmra.mxu0 %v768
    %v841 = vpop.f32.mrf.mxu0
    %v842 = vadd.f32 0.0, %v841
    %843 = vmatmul.f32.gmra.mxu0 %v769
    %v844 = vpop.f32.mrf.mxu0
    %v845 = vadd.f32 0.0, %v844
    %846 = vdwg.mxu0
    %847 = vmatpush.msra.mxu0 %v822
    %848 = vmatpush.msra.mxu0 %v819
    %849 = vmatpush.msra.mxu0 %v816
    %850 = vmatpush.msra.mxu0 %v813
    %851 = vmatpush.msra.mxu0 %v810
    %852 = vmatpush.msra.mxu0 %v807
    %853 = vmatpush.msra.mxu0 %v804
    %854 = vmatpush.msra.mxu0 %v801
    %855 = vmatpush.msra.mxu0 %v798
    %856 = vmatpush.msra.mxu0 %v795
    %857 = vmatpush.msra.mxu0 %v792
    %858 = vmatpush.msra.mxu0 %v789
    %859 = vmatpush.msra.mxu0 %v786
    %860 = vmatpush.msra.mxu0 %v783
    %861 = vmatpush.msra.mxu0 %v780
    %862 = vmatpush.msra.mxu0 %v777
    %863 = vmatmul.f32.gmra.mxu0 %v768
    %v864 = vpop.f32.mrf.mxu0
    %v865 = vadd.f32 0.0, %v864
    %866 = vmatmul.f32.gmra.mxu0 %v769
    %v867 = vpop.f32.mrf.mxu0
    %v868 = vadd.f32 0.0, %v867
    %869 = vdwg.mxu0
    %870 = vmatpush.msra.mxu0 %v823
    %871 = vmatpush.msra.mxu0 %v820
    %872 = vmatpush.msra.mxu0 %v817
    %873 = vmatpush.msra.mxu0 %v814
    %874 = vmatpush.msra.mxu0 %v811
    %875 = vmatpush.msra.mxu0 %v808
    %876 = vmatpush.msra.mxu0 %v805
    %877 = vmatpush.msra.mxu0 %v802
    %878 = vmatpush.msra.mxu0 %v799
    %879 = vmatpush.msra.mxu0 %v796
    %880 = vmatpush.msra.mxu0 %v793
    %881 = vmatpush.msra.mxu0 %v790
    %882 = vmatpush.msra.mxu0 %v787
    %883 = vmatpush.msra.mxu0 %v784
    %884 = vmatpush.msra.mxu0 %v781
    %885 = vmatpush.msra.mxu0 %v778
    %886 = vmatmul.f32.gmra.mxu0 %v768
    %v887 = vpop.f32.mrf.mxu0
    %v888 = vadd.f32 0.0, %v887
    %889 = vmatmul.f32.gmra.mxu0 %v769
    %v890 = vpop.f32.mrf.mxu0
    %v891 = vadd.f32 0.0, %v890
    %892 = vdwg.mxu0
    %893 = vmatpush.xpose.msra.mxu0 0.0
    %894 = vmatpush.xpose.msra.mxu0 0.0
    %895 = vmatpush.xpose.msra.mxu0 0.0
    %896 = vmatpush.xpose.msra.mxu0 0.0
    %897 = vmatpush.xpose.msra.mxu0 0.0
    %898 = vmatpush.xpose.msra.mxu0 0.0
    %899 = vmatpush.xpose.msra.mxu0 0.0
    %900 = vmatpush.xpose.msra.mxu0 0.0
    %901 = vmatpush.xpose.msra.mxu0 0.0
    %902 = vmatpush.xpose.msra.mxu0 0.0
    %903 = vmatpush.xpose.msra.mxu0 0.0
    %904 = vmatpush.xpose.msra.mxu0 0.0
    %905 = vmatpush.xpose.msra.mxu0 0.0
    %906 = vmatpush.xpose.msra.mxu0 0.0
    %907 = vmatpush.xpose.msra.mxu0 %v868
    %908 = vmatpush.xpose.msra.mxu0 %v865
    %909 = vmatmul.f32.gmra.mxu0 %v842
    %v910 = vpop.f32.mrf.mxu0
    %v911 = vadd.f32 %v197, %v910
    %912 = vmatmul.f32.gmra.mxu0 %v845
    %v913 = vpop.f32.mrf.mxu0
    %v914 = vadd.f32 %v198, %v913
    %915 = vdwg.mxu0
    %v916 = vsel %vm379, %v911, -inf
    %917 = vmax.xlane.f32.xlu0 %v916
    %v918 = vpop.xlane.xlu0 %917
    %v919 = vsel %vm379, %v914, -inf
    %920 = vmax.xlane.f32.xlu0 %v919
    %v921 = vpop.xlane.xlu0 %920
    %v922 = vsub.f32 %v911, %v918
    %v923 = vsub.f32 %v914, %v921
    %v924 = vmul.f32 %v922, 1.442695
    %v925 = vpow.pop %v924
    %v926 = vmul.f32 %v923, 1.442695
    %v927 = vpow.pop %v926
    %v928 = vsel %vm379, %v925, 0.0
    %929 = vadd.xlane.f32.xlu0 %v928
    %v930 = vpop.xlane.xlu0 %929
    %v931 = vsel %vm379, %v927, 0.0
    %932 = vadd.xlane.f32.xlu0 %v931
    %v933 = vpop.xlane.xlu0 %932
    %v934 = vrcp.pop %v930
    %v935 = vmul.f32 %v930, %v934
    %v936 = vsub.f32 1.0, %v935
    %v937 = vmul.f32 %v934, %v936
    %v938 = vadd.f32 %v934, %v937
    %vm939 = vweird.f32 %v930
    %vm940 = vweird.f32 %v934
    %vm941 = vmor %vm939, %vm940
    %v942 = vsel %vm941, %v934, %v938
    %v943 = vand.u32 2147483647, %v930
    %vm944 = vcmp.eq.f32.partialorder %v943, 8.507059e+37
    %v945 = vand.u32 %v930, 2147483648
    %v946 = vor.u32 1.1754944e-38, %v945
    %v947 = vsel %vm944, %v946, %v942
    %v948 = vrcp.pop %v933
    %v949 = vmul.f32 %v933, %v948
    %v950 = vsub.f32 1.0, %v949
    %v951 = vmul.f32 %v948, %v950
    %v952 = vadd.f32 %v948, %v951
    %vm953 = vweird.f32 %v933
    %vm954 = vweird.f32 %v948
    %vm955 = vmor %vm953, %vm954
    %v956 = vsel %vm955, %v948, %v952
    %v957 = vand.u32 2147483647, %v933
    %vm958 = vcmp.eq.f32.partialorder %v957, 8.507059e+37
    %v959 = vand.u32 %v933, 2147483648
    %v960 = vor.u32 1.1754944e-38, %v959
    %v961 = vsel %vm958, %v960, %v956
    %v962 = vmul.f32 %v925, %v947
    %v963 = vmul.f32 %v927, %v961
    %v965 = vsel %vm379, %v962, 0
    %v968 = vsel %vm379, %v963, 0
    %970 = vmatpush.msra.mxu0 0.0
    %971 = vmatpush.msra.mxu0 0.0
    %972 = vmatpush.msra.mxu0 0.0
    %973 = vmatpush.msra.mxu0 0.0
    %974 = vmatpush.msra.mxu0 0.0
    %975 = vmatpush.msra.mxu0 0.0
    %976 = vmatpush.msra.mxu0 0.0
    %977 = vmatpush.msra.mxu0 0.0
    %978 = vmatpush.msra.mxu0 0.0
    %979 = vmatpush.msra.mxu0 0.0
    %980 = vmatpush.msra.mxu0 0.0
    %981 = vmatpush.msra.mxu0 0.0
    %982 = vmatpush.msra.mxu0 0.0
    %983 = vmatpush.msra.mxu0 0.0
    %984 = vmatpush.msra.mxu0 %v891
    %985 = vmatpush.msra.mxu0 %v888
    %986 = vmatmul.f32.gmra.mxu0 %v965
    %v987 = vpop.f32.mrf.mxu0
    %v988 = vadd.f32 0.0, %v987
    %989 = vmatmul.f32.gmra.mxu0 %v968
    %v990 = vpop.f32.mrf.mxu0
    %v991 = vadd.f32 0.0, %v990
    %992 = vdwg.mxu0
    %v993 = vld [vmem:[#allocation13] sm:$0xff]
    %v994 = vld [vmem:[#allocation13 + $0x8] sm:$0xff]
    %v995 = vld [vmem:[#allocation13 + $0x10] sm:$0xff]
    %v996 = vld [vmem:[#allocation13 + $0x18] sm:$0xff]
    %v997 = vld [vmem:[#allocation13 + $0x20] sm:$0xff]
    %v998 = vld [vmem:[#allocation13 + $0x28] sm:$0xff]
    %v999 = vld [vmem:[#allocation13 + $0x30] sm:$0xff]
    %v1000 = vld [vmem:[#allocation13 + $0x38] sm:$0xff]
    %v1001 = vld [vmem:[#allocation13 + $0x40] sm:$0xff]
    %v1002 = vld [vmem:[#allocation13 + $0x48] sm:$0xff]
    %v1003 = vld [vmem:[#allocation13 + $0x50] sm:$0xff]
    %v1004 = vld [vmem:[#allocation13 + $0x58] sm:$0xff]
    %v1005 = vld [vmem:[#allocation13 + $0x60] sm:$0xff]
    %v1006 = vld [vmem:[#allocation13 + $0x68] sm:$0xff]
    %v1007 = vld [vmem:[#allocation13 + $0x70] sm:$0xff]
    %v1008 = vld [vmem:[#allocation13 + $0x78] sm:$0xff]
    %v1009 = vld [vmem:[#allocation13 + $0x80] sm:$0xff]
    %v1010 = vld [vmem:[#allocation13 + $0x88] sm:$0xff]
    %v1011 = vld [vmem:[#allocation13 + $0x90] sm:$0xff]
    %v1012 = vld [vmem:[#allocation13 + $0x98] sm:$0xff]
    %v1013 = vld [vmem:[#allocation13 + $0xa0] sm:$0xff]
    %v1014 = vld [vmem:[#allocation13 + $0xa8] sm:$0xff]
    %v1015 = vld [vmem:[#allocation13 + $0xb0] sm:$0xff]
    %v1016 = vld [vmem:[#allocation13 + $0xb8] sm:$0xff]
    %v1017 = vld [vmem:[#allocation13 + $0xc0] sm:$0xff]
    %v1018 = vld [vmem:[#allocation13 + $0xc8] sm:$0xff]
    %v1019 = vld [vmem:[#allocation13 + $0xd0] sm:$0xff]
    %v1020 = vld [vmem:[#allocation13 + $0xd8] sm:$0xff]
    %v1021 = vld [vmem:[#allocation13 + $0xe0] sm:$0xff]
    %v1022 = vld [vmem:[#allocation13 + $0xe8] sm:$0xff]
    %v1023 = vld [vmem:[#allocation13 + $0xf0] sm:$0xff]
    %v1024 = vld [vmem:[#allocation13 + $0xf8] sm:$0xff]
    %v1025 = vld [vmem:[#allocation13 + $0x100] sm:$0xff]
    %v1026 = vld [vmem:[#allocation13 + $0x108] sm:$0xff]
    %v1027 = vld [vmem:[#allocation13 + $0x110] sm:$0xff]
    %v1028 = vld [vmem:[#allocation13 + $0x118] sm:$0xff]
    %v1029 = vld [vmem:[#allocation13 + $0x120] sm:$0xff]
    %v1030 = vld [vmem:[#allocation13 + $0x128] sm:$0xff]
    %v1031 = vld [vmem:[#allocation13 + $0x130] sm:$0xff]
    %v1032 = vld [vmem:[#allocation13 + $0x138] sm:$0xff]
    %v1033 = vld [vmem:[#allocation13 + $0x140] sm:$0xff]
    %v1034 = vld [vmem:[#allocation13 + $0x148] sm:$0xff]
    %v1035 = vld [vmem:[#allocation13 + $0x150] sm:$0xff]
    %v1036 = vld [vmem:[#allocation13 + $0x158] sm:$0xff]
    %v1037 = vld [vmem:[#allocation13 + $0x160] sm:$0xff]
    %v1038 = vld [vmem:[#allocation13 + $0x168] sm:$0xff]
    %v1039 = vld [vmem:[#allocation13 + $0x170] sm:$0xff]
    %v1040 = vld [vmem:[#allocation13 + $0x178] sm:$0xff]
    %1041 = vmatpush.msra.mxu0 %v1038
    %1042 = vmatpush.msra.mxu0 %v1035
    %1043 = vmatpush.msra.mxu0 %v1032
    %1044 = vmatpush.msra.mxu0 %v1029
    %1045 = vmatpush.msra.mxu0 %v1026
    %1046 = vmatpush.msra.mxu0 %v1023
    %1047 = vmatpush.msra.mxu0 %v1020
    %1048 = vmatpush.msra.mxu0 %v1017
    %1049 = vmatpush.msra.mxu0 %v1014
    %1050 = vmatpush.msra.mxu0 %v1011
    %1051 = vmatpush.msra.mxu0 %v1008
    %1052 = vmatpush.msra.mxu0 %v1005
    %1053 = vmatpush.msra.mxu0 %v1002
    %1054 = vmatpush.msra.mxu0 %v999
    %1055 = vmatpush.msra.mxu0 %v996
    %1056 = vmatpush.msra.mxu0 %v993
    %1057 = vmatmul.f32.gmra.mxu0 %v988
    %v1058 = vpop.f32.mrf.mxu0
    %v1059 = vadd.f32 0.0, %v1058
    %1060 = vmatmul.f32.gmra.mxu0 %v991
    %v1061 = vpop.f32.mrf.mxu0
    %v1062 = vadd.f32 0.0, %v1061
    %1063 = vdwg.mxu0
    %1064 = vmatpush.msra.mxu0 %v1039
    %1065 = vmatpush.msra.mxu0 %v1036
    %1066 = vmatpush.msra.mxu0 %v1033
    %1067 = vmatpush.msra.mxu0 %v1030
    %1068 = vmatpush.msra.mxu0 %v1027
    %1069 = vmatpush.msra.mxu0 %v1024
    %1070 = vmatpush.msra.mxu0 %v1021
    %1071 = vmatpush.msra.mxu0 %v1018
    %1072 = vmatpush.msra.mxu0 %v1015
    %1073 = vmatpush.msra.mxu0 %v1012
    %1074 = vmatpush.msra.mxu0 %v1009
    %1075 = vmatpush.msra.mxu0 %v1006
    %1076 = vmatpush.msra.mxu0 %v1003
    %1077 = vmatpush.msra.mxu0 %v1000
    %1078 = vmatpush.msra.mxu0 %v997
    %1079 = vmatpush.msra.mxu0 %v994
    %1080 = vmatmul.f32.gmra.mxu0 %v988
    %v1081 = vpop.f32.mrf.mxu0
    %v1082 = vadd.f32 0.0, %v1081
    %1083 = vmatmul.f32.gmra.mxu0 %v991
    %v1084 = vpop.f32.mrf.mxu0
    %v1085 = vadd.f32 0.0, %v1084
    %1086 = vdwg.mxu0
    %1087 = vmatpush.msra.mxu0 %v1040
    %1088 = vmatpush.msra.mxu0 %v1037
    %1089 = vmatpush.msra.mxu0 %v1034
    %1090 = vmatpush.msra.mxu0 %v1031
    %1091 = vmatpush.msra.mxu0 %v1028
    %1092 = vmatpush.msra.mxu0 %v1025
    %1093 = vmatpush.msra.mxu0 %v1022
    %1094 = vmatpush.msra.mxu0 %v1019
    %1095 = vmatpush.msra.mxu0 %v1016
    %1096 = vmatpush.msra.mxu0 %v1013
    %1097 = vmatpush.msra.mxu0 %v1010
    %1098 = vmatpush.msra.mxu0 %v1007
    %1099 = vmatpush.msra.mxu0 %v1004
    %1100 = vmatpush.msra.mxu0 %v1001
    %1101 = vmatpush.msra.mxu0 %v998
    %1102 = vmatpush.msra.mxu0 %v995
    %1103 = vmatmul.f32.gmra.mxu0 %v988
    %v1104 = vpop.f32.mrf.mxu0
    %v1105 = vadd.f32 0.0, %v1104
    %1106 = vmatmul.f32.gmra.mxu0 %v991
    %v1107 = vpop.f32.mrf.mxu0
    %v1108 = vadd.f32 0.0, %v1107
    %1109 = vdwg.mxu0
    %1110 = vmatpush.xpose.msra.mxu0 0.0
    %1111 = vmatpush.xpose.msra.mxu0 0.0
    %1112 = vmatpush.xpose.msra.mxu0 0.0
    %1113 = vmatpush.xpose.msra.mxu0 0.0
    %1114 = vmatpush.xpose.msra.mxu0 0.0
    %1115 = vmatpush.xpose.msra.mxu0 0.0
    %1116 = vmatpush.xpose.msra.mxu0 0.0
    %1117 = vmatpush.xpose.msra.mxu0 0.0
    %1118 = vmatpush.xpose.msra.mxu0 0.0
    %1119 = vmatpush.xpose.msra.mxu0 0.0
    %1120 = vmatpush.xpose.msra.mxu0 0.0
    %1121 = vmatpush.xpose.msra.mxu0 0.0
    %1122 = vmatpush.xpose.msra.mxu0 0.0
    %1123 = vmatpush.xpose.msra.mxu0 0.0
    %1124 = vmatpush.xpose.msra.mxu0 %v1085
    %1125 = vmatpush.xpose.msra.mxu0 %v1082
    %1126 = vmatmul.f32.gmra.mxu0 %v1059
    %v1127 = vpop.f32.mrf.mxu0
    %v1128 = vadd.f32 %v197, %v1127
    %1129 = vmatmul.f32.gmra.mxu0 %v1062
    %v1130 = vpop.f32.mrf.mxu0
    %v1131 = vadd.f32 %v198, %v1130
    %1132 = vdwg.mxu0
    %v1133 = vsel %vm379, %v1128, -inf
    %1134 = vmax.xlane.f32.xlu0 %v1133
    %v1135 = vpop.xlane.xlu0 %1134
    %v1136 = vsel %vm379, %v1131, -inf
    %1137 = vmax.xlane.f32.xlu0 %v1136
    %v1138 = vpop.xlane.xlu0 %1137
    %v1139 = vsub.f32 %v1128, %v1135
    %v1140 = vsub.f32 %v1131, %v1138
    %v1141 = vmul.f32 %v1139, 1.442695
    %v1142 = vpow.pop %v1141
    %v1143 = vmul.f32 %v1140, 1.442695
    %v1144 = vpow.pop %v1143
    %v1145 = vsel %vm379, %v1142, 0.0
    %1146 = vadd.xlane.f32.xlu0 %v1145
    %v1147 = vpop.xlane.xlu0 %1146
    %v1148 = vsel %vm379, %v1144, 0.0
    %1149 = vadd.xlane.f32.xlu0 %v1148
    %v1150 = vpop.xlane.xlu0 %1149
    %v1151 = vrcp.pop %v1147
    %v1152 = vmul.f32 %v1147, %v1151
    %v1153 = vsub.f32 1.0, %v1152
    %v1154 = vmul.f32 %v1151, %v1153
    %v1155 = vadd.f32 %v1151, %v1154
    %vm1156 = vweird.f32 %v1147
    %vm1157 = vweird.f32 %v1151
    %vm1158 = vmor %vm1156, %vm1157
    %v1159 = vsel %vm1158, %v1151, %v1155
    %v1160 = vand.u32 2147483647, %v1147
    %vm1161 = vcmp.eq.f32.partialorder %v1160, 8.507059e+37
    %v1162 = vand.u32 %v1147, 2147483648
    %v1163 = vor.u32 1.1754944e-38, %v1162
    %v1164 = vsel %vm1161, %v1163, %v1159
    %v1165 = vrcp.pop %v1150
    %v1166 = vmul.f32 %v1150, %v1165
    %v1167 = vsub.f32 1.0, %v1166
    %v1168 = vmul.f32 %v1165, %v1167
    %v1169 = vadd.f32 %v1165, %v1168
    %vm1170 = vweird.f32 %v1150
    %vm1171 = vweird.f32 %v1165
    %vm1172 = vmor %vm1170, %vm1171
    %v1173 = vsel %vm1172, %v1165, %v1169
    %v1174 = vand.u32 2147483647, %v1150
    %vm1175 = vcmp.eq.f32.partialorder %v1174, 8.507059e+37
    %v1176 = vand.u32 %v1150, 2147483648
    %v1177 = vor.u32 1.1754944e-38, %v1176
    %v1178 = vsel %vm1175, %v1177, %v1173
    %v1179 = vmul.f32 %v1142, %v1164
    %v1180 = vmul.f32 %v1144, %v1178
    %v1182 = vsel %vm379, %v1179, 0
    %v1185 = vsel %vm379, %v1180, 0
    %1187 = vmatpush.msra.mxu0 0.0
    %1188 = vmatpush.msra.mxu0 0.0
    %1189 = vmatpush.msra.mxu0 0.0
    %1190 = vmatpush.msra.mxu0 0.0
    %1191 = vmatpush.msra.mxu0 0.0
    %1192 = vmatpush.msra.mxu0 0.0
    %1193 = vmatpush.msra.mxu0 0.0
    %1194 = vmatpush.msra.mxu0 0.0
    %1195 = vmatpush.msra.mxu0 0.0
    %1196 = vmatpush.msra.mxu0 0.0
    %1197 = vmatpush.msra.mxu0 0.0
    %1198 = vmatpush.msra.mxu0 0.0
    %1199 = vmatpush.msra.mxu0 0.0
    %1200 = vmatpush.msra.mxu0 0.0
    %1201 = vmatpush.msra.mxu0 %v1108
    %1202 = vmatpush.msra.mxu0 %v1105
    %1203 = vmatmul.f32.gmra.mxu0 %v1182
    %v1204 = vpop.f32.mrf.mxu0
    %v1205 = vadd.f32 0.0, %v1204
    %1206 = vmatmul.f32.gmra.mxu0 %v1185
    %v1207 = vpop.f32.mrf.mxu0
    %v1208 = vadd.f32 0.0, %v1207
    %1209 = vdwg.mxu0
    %v1210 = vld [vmem:[#allocation14] sm:$0xff]
    %v1211 = vld [vmem:[#allocation14 + $0x8] sm:$0xff]
    %v1212 = vld [vmem:[#allocation14 + $0x10] sm:$0xff]
    %v1213 = vld [vmem:[#allocation14 + $0x18] sm:$0xff]
    %v1214 = vld [vmem:[#allocation14 + $0x20] sm:$0xff]
    %v1215 = vld [vmem:[#allocation14 + $0x28] sm:$0xff]
    %v1216 = vld [vmem:[#allocation14 + $0x30] sm:$0xff]
    %v1217 = vld [vmem:[#allocation14 + $0x38] sm:$0xff]
    %v1218 = vld [vmem:[#allocation14 + $0x40] sm:$0xff]
    %v1219 = vld [vmem:[#allocation14 + $0x48] sm:$0xff]
    %v1220 = vld [vmem:[#allocation14 + $0x50] sm:$0xff]
    %v1221 = vld [vmem:[#allocation14 + $0x58] sm:$0xff]
    %v1222 = vld [vmem:[#allocation14 + $0x60] sm:$0xff]
    %v1223 = vld [vmem:[#allocation14 + $0x68] sm:$0xff]
    %v1224 = vld [vmem:[#allocation14 + $0x70] sm:$0xff]
    %v1225 = vld [vmem:[#allocation14 + $0x78] sm:$0xff]
    %1226 = vmatpush.msra.mxu0 %v1225
    %1227 = vmatpush.msra.mxu0 %v1224
    %1228 = vmatpush.msra.mxu0 %v1223
    %1229 = vmatpush.msra.mxu0 %v1222
    %1230 = vmatpush.msra.mxu0 %v1221
    %1231 = vmatpush.msra.mxu0 %v1220
    %1232 = vmatpush.msra.mxu0 %v1219
    %1233 = vmatpush.msra.mxu0 %v1218
    %1234 = vmatpush.msra.mxu0 %v1217
    %1235 = vmatpush.msra.mxu0 %v1216
    %1236 = vmatpush.msra.mxu0 %v1215
    %1237 = vmatpush.msra.mxu0 %v1214
    %1238 = vmatpush.msra.mxu0 %v1213
    %1239 = vmatpush.msra.mxu0 %v1212
    %1240 = vmatpush.msra.mxu0 %v1211
    %1241 = vmatpush.msra.mxu0 %v1210
    %1242 = vmatmul.f32.gmra.mxu0 %v1205
    %v1243 = vpop.f32.mrf.mxu0
    %v1244 = vadd.f32 0.0, %v1243
    %1245 = vmatmul.f32.gmra.mxu0 %v1208
    %v1246 = vpop.f32.mrf.mxu0
    %v1247 = vadd.f32 0.0, %v1246
    %1248 = vdwg.mxu0
    %1249 = vst [vmem:[#allocation17] sm:$0xff] %v1244
    %1250 = vst [vmem:[#allocation17 + $0x8] sm:$0xff] %v1247
    %1251 = vst.msk [vmem:[#allocation20] sm:$0xff] %vm379, %v426
    %1252 = vst.msk [vmem:[#allocation20 + $0x8] sm:$0xff] %vm379, %v427
    %1253 = vst.msk [vmem:[#allocation21] sm:$0xff] %vm379, %v643
    %1254 = vst.msk [vmem:[#allocation21 + $0x8] sm:$0xff] %vm379, %v644
    %1255 = vst.msk [vmem:[#allocation23] sm:$0xff] %vm379, %v962
    %1256 = vst.msk [vmem:[#allocation23 + $0x8] sm:$0xff] %vm379, %v963
    %1257 = vst.msk [vmem:[#allocation24] sm:$0xff] %vm379, %v1179
    %1258 = vst.msk [vmem:[#allocation24 + $0x8] sm:$0xff] %vm379, %v1180
    // Predicated region
    $region86: #{tpu_custom_call.1} parent=1 // pred_check
      _
    $region87: #{tpu_custom_call.1} parent=1 // pred_check_branch
      %1260 = sbr.rel (0) target = $region89
    $region88: #{tpu_custom_call.1} parent=1 // pred_region
      %1262 = vsyncadd [#allocation4], 0
      %s1263 = sshll.u32 [#allocation17], 4
      %s1264 = int_to_ptr.vmem [resolvable:$true] %s1263
      %s1265 = sshll.u32 %s12, 4
      %s1266 = int_to_ptr.hbm [resolvable:$true] %s1265
      %1271 = dma.vmem_to_hbm [thread:$0]  %s1264, 256, %s1266, [#allocation4], 128, 128, 8
    $region89: #{tpu_custom_call.1} parent=1 // pred_fallthru
      _
    // Predicated region
    $region90: #{tpu_custom_call.1} parent=1 // pred_check
      _
    $region91: #{tpu_custom_call.1} parent=1 // pred_check_branch
      %1273 = sbr.rel (0) target = $region93
    $region92: #{tpu_custom_call.1} parent=1 // pred_region
      %1275 = vsyncadd [#allocation19], 0
      %s1276 = sshll.u32 [#allocation18], 4
      %s1277 = int_to_ptr.vmem [resolvable:$true] %s1276
      %s1278 = sshll.u32 %s13, 4
      %s1279 = int_to_ptr.hbm [resolvable:$true] %s1278
      %1284 = dma.vmem_to_hbm [thread:$0]  %s1277, 768, %s1279, [#allocation19], 384, 384, 24
    $region93: #{tpu_custom_call.1} parent=1 // pred_fallthru
      _
    // Predicated region
    $region94: #{tpu_custom_call.1} parent=1 // pred_check
      _
    $region95: #{tpu_custom_call.1} parent=1 // pred_check_branch
      %1286 = sbr.rel (0) target = $region97
    $region96: #{tpu_custom_call.1} parent=1 // pred_region
      %1288 = vsyncadd [#allocation19], 0
      %s1289 = sshll.u32 [#allocation20], 4
      %s1290 = int_to_ptr.vmem [resolvable:$true] %s1289
      %s1291 = sshll.u32 %s14, 4
      %s1292 = int_to_ptr.hbm [resolvable:$true] %s1291
      %1297 = dma.vmem_to_hbm [thread:$0]  %s1290, 256, %s1292, [#allocation19], 128, 128, 8
    $region97: #{tpu_custom_call.1} parent=1 // pred_fallthru
      _
    // Predicated region
    $region98: #{tpu_custom_call.1} parent=1 // pred_check
      _
    $region99: #{tpu_custom_call.1} parent=1 // pred_check_branch
      %1299 = sbr.rel (0) target = $region101
    $region100: #{tpu_custom_call.1} parent=1 // pred_region
      %1301 = vsyncadd [#allocation22], 0
      %s1302 = sshll.u32 [#allocation21], 4
      %s1303 = int_to_ptr.vmem [resolvable:$true] %s1302
      %s1304 = sshll.u32 %s15, 4
      %s1305 = int_to_ptr.hbm [resolvable:$true] %s1304
      %1310 = dma.vmem_to_hbm [thread:$0]  %s1303, 256, %s1305, [#allocation22], 128, 128, 8
    $region101: #{tpu_custom_call.1} parent=1 // pred_fallthru
      _
    // Predicated region
    $region102: #{tpu_custom_call.1} parent=1 // pred_check
      _
    $region103: #{tpu_custom_call.1} parent=1 // pred_check_branch
      %1312 = sbr.rel (0) target = $region105
    $region104: #{tpu_custom_call.1} parent=1 // pred_region
      %1314 = vsyncadd [#allocation22], 0
      %s1315 = sshll.u32 [#allocation23], 4
      %s1316 = int_to_ptr.vmem [resolvable:$true] %s1315
      %s1317 = sshll.u32 %s16, 4
      %s1318 = int_to_ptr.hbm [resolvable:$true] %s1317
      %1323 = dma.vmem_to_hbm [thread:$0]  %s1316, 256, %s1318, [#allocation22], 128, 128, 8
    $region105: #{tpu_custom_call.1} parent=1 // pred_fallthru
      _
    // Predicated region
    $region106: #{tpu_custom_call.1} parent=1 // pred_check
      _
    $region107: #{tpu_custom_call.1} parent=1 // pred_check_branch
      %1325 = sbr.rel (0) target = $region109
    $region108: #{tpu_custom_call.1} parent=1 // pred_region
      %1327 = vsyncadd [#allocation25], 0
      %s1328 = sshll.u32 [#allocation24], 4
      %s1329 = int_to_ptr.vmem [resolvable:$true] %s1328
      %s1330 = sshll.u32 %s17, 4
      %s1331 = int_to_ptr.hbm [resolvable:$true] %s1330
      %1336 = dma.vmem_to_hbm [thread:$0]  %s1329, 256, %s1331, [#allocation25], 128, 128, 8
    $region109: #{tpu_custom_call.1} parent=1 // pred_fallthru
      _
    // Predicated region
    $region110: #{tpu_custom_call.1} parent=1 // pred_check
      _
    $region111: #{tpu_custom_call.1} parent=1 // pred_check_branch
      %1338 = sbr.rel (0) target = $region113
    $region112: #{tpu_custom_call.1} parent=1 // pred_region
      %1340 = dma.done [#allocation4], 256
    $region113: #{tpu_custom_call.1} parent=1 // pred_fallthru
      _
    // Predicated region
    $region114: #{tpu_custom_call.1} parent=1 // pred_check
      _
    $region115: #{tpu_custom_call.1} parent=1 // pred_check_branch
      %1342 = sbr.rel (0) target = $region117
    $region116: #{tpu_custom_call.1} parent=1 // pred_region
      %1344 = dma.done [#allocation19], 768
    $region117: #{tpu_custom_call.1} parent=1 // pred_fallthru
      _
    // Predicated region
    $region118: #{tpu_custom_call.1} parent=1 // pred_check
      _
    $region119: #{tpu_custom_call.1} parent=1 // pred_check_branch
      %1346 = sbr.rel (0) target = $region121
    $region120: #{tpu_custom_call.1} parent=1 // pred_region
      %1348 = dma.done [#allocation19], 256
    $region121: #{tpu_custom_call.1} parent=1 // pred_fallthru
      _
    // Predicated region
    $region122: #{tpu_custom_call.1} parent=1 // pred_check
      _
    $region123: #{tpu_custom_call.1} parent=1 // pred_check_branch
      %1350 = sbr.rel (0) target = $region125
    $region124: #{tpu_custom_call.1} parent=1 // pred_region
      %1352 = dma.done [#allocation22], 256
    $region125: #{tpu_custom_call.1} parent=1 // pred_fallthru
      _
    // Predicated region
    $region126: #{tpu_custom_call.1} parent=1 // pred_check
      _
    $region127: #{tpu_custom_call.1} parent=1 // pred_check_branch
      %1354 = sbr.rel (0) target = $region129
    $region128: #{tpu_custom_call.1} parent=1 // pred_region
      %1356 = dma.done [#allocation22], 256
    $region129: #{tpu_custom_call.1} parent=1 // pred_fallthru
      _
    // Predicated region
    $region130: #{tpu_custom_call.1} parent=1 // pred_check
      _
    $region131: #{tpu_custom_call.1} parent=1 // pred_check_branch
      %1358 = sbr.rel (0) target = $region133
    $region132: #{tpu_custom_call.1} parent=1 // pred_region
      %1360 = dma.done [#allocation25], 256
    $region133: #{tpu_custom_call.1} parent=1 // pred_fallthru
      _
    %1361 = vsyncpa [#allocation3], 1
    %1362 = vsyncpa [#allocation6], 1
    %1363 = vsyncpa [#allocation9], 1
    %1364 = vsyncpa [#allocation12], 1
    %1365 = vsyncpa [#allocation15], 1
    %1366 = vsyncpa [#allocation4], 1
    %1367 = vsyncpa [#allocation19], 1
    %1368 = vsyncpa [#allocation22], 1
    %1369 = vsyncpa [#allocation25], 1

</llo_original>
